<compile_context>
chip_gen: v6e
topology: v6e:2x2x1
jax: 0.10.0
libtpu: 0.0.40
codegen_flags: <defaults>
</compile_context>

<pallas_src>
import jax
import jax.numpy as jnp
from jax.experimental import pallas as pl
from jax.experimental.pallas import tpu as pltpu

INPUT_DIM = 784
HIDDEN_DIMS = [256, 128]
LATENT_DIM = 20

LATENT_PAD = 128          # lane-dense padding of the 20-wide latent COMPUTE path


def _round_up(n, m):
    return (n + m - 1) // m * m


def _choose_tile_b(batch):
    """Pick a batch tile that divides `batch` (no pad copy), is bf16-friendly
    (>= 16 when possible), and leaves >= 2 grid steps so both v7x TCs run."""
    for tb in (256, 128, 64, 32, 16):
        if batch % tb == 0 and batch // tb >= 2:
            return tb
    for tb in (256, 128, 64, 32, 16, 8):
        if batch % tb == 0:
            return tb
    return min(256, _round_up(max(batch, 1), 16))


def _vae_kernel(x_ref,
                ew1_ref, eb1_ref, ew2_ref, eb2_ref, ew3_ref, eb3_ref,
                dw1_ref, db1_ref, dw2_ref, db2_ref, dw3_ref, db3_ref,
                recon_ref, mean_ref):
    """One TILE_B-row batch tile of the fused VAE forward (bf16 MXU inputs, f32 accum)."""
    x = x_ref[...].astype(jnp.bfloat16)                # in-kernel f32 -> bf16 cast

    # ---- Encoder: Linear(784,256)+ReLU, Linear(256,128)+ReLU, Linear(128,20 [pad 128])
    h = jnp.dot(x, ew1_ref[...], preferred_element_type=jnp.float32) + eb1_ref[...]
    h = jnp.maximum(h, 0.0).astype(jnp.bfloat16)
    h = jnp.dot(h, ew2_ref[...], preferred_element_type=jnp.float32) + eb2_ref[...]
    h = jnp.maximum(h, 0.0).astype(jnp.bfloat16)
    enc = jnp.dot(h, ew3_ref[...], preferred_element_type=jnp.float32) + eb3_ref[...]
    # ew3/eb3 columns >= LATENT_DIM are zero, so enc[:, LATENT_DIM:] == 0 exactly.
    mean_ref[...] = enc[:, :LATENT_DIM]                # (tb, 20) store (tiny, masked)

    # TODO(synk): torch's log_var = encoded[:, latent_dim:] is width-0 (the encoder's
    # last Linear is latent_dim wide), making `mean + eps * std` an invalid broadcast;
    # z == mean (no sampling noise) is the only runnable reading, so no PRNG draw here.
    z = enc.astype(jnp.bfloat16)

    # ---- Decoder: Linear(20[pad128],128)+ReLU, Linear(128,256)+ReLU, Linear(256,784)+Sigmoid
    d = jnp.dot(z, dw1_ref[...], preferred_element_type=jnp.float32) + db1_ref[...]
    d = jnp.maximum(d, 0.0).astype(jnp.bfloat16)
    d = jnp.dot(d, dw2_ref[...], preferred_element_type=jnp.float32) + db2_ref[...]
    d = jnp.maximum(d, 0.0).astype(jnp.bfloat16)
    logits = jnp.dot(d, dw3_ref[...], preferred_element_type=jnp.float32) + db3_ref[...]
    recon_ref[...] = jax.nn.sigmoid(logits).astype(jnp.bfloat16)   # 784-wide bf16 store


def init_params(key):
    """Deterministic init matching torch.nn.Linear shapes (U(-1/sqrt(fan_in), +)), f32."""
    def linear(key, fan_in, fan_out):
        kw, kb = jax.random.split(key)
        bound = 1.0 / jnp.sqrt(float(fan_in))
        w = jax.random.uniform(kw, (fan_in, fan_out), jnp.float32, -bound, bound)
        b = jax.random.uniform(kb, (1, fan_out), jnp.float32, -bound, bound)
        return w, b

    keys = jax.random.split(key, 6)
    # Encoder: 784 -> 256 -> 128 -> 20
    ew1, eb1 = linear(keys[0], INPUT_DIM, HIDDEN_DIMS[0])
    ew2, eb2 = linear(keys[1], HIDDEN_DIMS[0], HIDDEN_DIMS[1])
    ew3, eb3 = linear(keys[2], HIDDEN_DIMS[1], LATENT_DIM)
    # Decoder: 20 -> 128 -> 256 -> 784
    dw1, db1 = linear(keys[3], LATENT_DIM, HIDDEN_DIMS[1])
    dw2, db2 = linear(keys[4], HIDDEN_DIMS[1], HIDDEN_DIMS[0])
    dw3, db3 = linear(keys[5], HIDDEN_DIMS[0], INPUT_DIM)
    return (ew1, eb1, ew2, eb2, ew3, eb3, dw1, db1, dw2, db2, dw3, db3)


def prepare_params(params):
    """Pad only the latent COMPUTE path to 128 lanes; weights cast to bf16, biases f32."""
    (ew1, eb1, ew2, eb2, ew3, eb3, dw1, db1, dw2, db2, dw3, db3) = params
    ew3p = jnp.zeros((HIDDEN_DIMS[1], LATENT_PAD), jnp.float32).at[:, :LATENT_DIM].set(ew3)
    eb3p = jnp.zeros((1, LATENT_PAD), jnp.float32).at[:, :LATENT_DIM].set(eb3)
    dw1p = jnp.zeros((LATENT_PAD, HIDDEN_DIMS[1]), jnp.float32).at[:LATENT_DIM, :].set(dw1)
    bf16 = lambda w: w.astype(jnp.bfloat16)
    # dw3/db3 kept at true width 784 -> no wasted matmul columns, no depad of recon.
    return (bf16(ew1), eb1, bf16(ew2), eb2, bf16(ew3p), eb3p,
            bf16(dw1p), db1, bf16(dw2), db2, bf16(dw3), db3)


@jax.jit
def vae_forward(x, prepared):
    x2d = x.reshape(-1, INPUT_DIM).astype(jnp.float32)   # x.view(-1, 784); cast->bf16 is in-kernel
    batch = x2d.shape[0]

    tile_b = _choose_tile_b(batch)
    b_pad = _round_up(batch, tile_b)
    if b_pad != batch:                                    # rare: tile chosen to divide batch
        x2d = jnp.pad(x2d, ((0, b_pad - batch), (0, 0)))

    grid = (b_pad // tile_b,)

    # Weights/biases: constant index_map -> fetched once, VMEM-resident across steps.
    in_specs = [pl.BlockSpec((tile_b, INPUT_DIM), lambda i: (i, 0))]
    in_specs += [pl.BlockSpec(p.shape, lambda i: (0, 0)) for p in prepared]

    param_bytes = sum(int(p.size) * p.dtype.itemsize for p in prepared)
    flops = 2 * b_pad * (INPUT_DIM * HIDDEN_DIMS[0]
                         + HIDDEN_DIMS[0] * HIDDEN_DIMS[1]
                         + HIDDEN_DIMS[1] * LATENT_PAD
                         + LATENT_PAD * HIDDEN_DIMS[1]
                         + HIDDEN_DIMS[1] * HIDDEN_DIMS[0]
                         + HIDDEN_DIMS[0] * INPUT_DIM)
    bytes_accessed = (b_pad * INPUT_DIM * 4          # x (f32 in)
                      + param_bytes                  # weights (bf16) + biases (f32)
                      + b_pad * INPUT_DIM * 2        # recon (bf16 out)
                      + b_pad * LATENT_DIM * 4)      # mean (f32 out)

    recon, mean = pl.pallas_call(
        _vae_kernel,
        grid=grid,
        out_shape=(
            jax.ShapeDtypeStruct((b_pad, INPUT_DIM), jnp.bfloat16),
            jax.ShapeDtypeStruct((b_pad, LATENT_DIM), jnp.float32),
        ),
        in_specs=in_specs,
        out_specs=(
            pl.BlockSpec((tile_b, INPUT_DIM), lambda i: (i, 0)),
            pl.BlockSpec((tile_b, LATENT_DIM), lambda i: (i, 0)),
        ),
        compiler_params=pltpu.CompilerParams(
            dimension_semantics=("parallel",),        # shard batch tiles over v7x's 2 TCs
            vmem_limit_bytes=16 << 20,                # footprint ~5 MiB even at tile_b=256
        ),
        cost_estimate=pl.CostEstimate(
            flops=flops,
            transcendentals=b_pad * INPUT_DIM,        # sigmoid exps (784 wide)
            bytes_accessed=bytes_accessed,
        ),
    )(x2d, *prepared)

    if b_pad != batch:
        recon = recon[:batch]
        mean = mean[:batch]
    log_var = jnp.zeros((batch, 0), jnp.float32)      # encoded[:, latent_dim:] is width-0
    return recon, mean, log_var


def _reference_forward(x, prepared):
    """Pure-JAX reference mirroring the kernel's bf16-weight / f32-accum arithmetic."""
    (ew1, eb1, ew2, eb2, ew3, eb3, dw1, db1, dw2, db2, dw3, db3) = prepared
    f32 = lambda a: a.astype(jnp.float32)
    x2d = x.reshape(-1, INPUT_DIM).astype(jnp.bfloat16)
    h = jnp.maximum(f32(x2d) @ f32(ew1) + eb1, 0.0).astype(jnp.bfloat16)
    h = jnp.maximum(f32(h) @ f32(ew2) + eb2, 0.0).astype(jnp.bfloat16)
    enc = f32(h) @ f32(ew3) + eb3                     # (B, 128) padded; cols >= 20 are 0
    mean = enc[:, :LATENT_DIM]
    z = enc.astype(jnp.bfloat16)
    d = jnp.maximum(f32(z) @ f32(dw1) + db1, 0.0).astype(jnp.bfloat16)
    d = jnp.maximum(f32(d) @ f32(dw2) + db2, 0.0).astype(jnp.bfloat16)
    recon = jax.nn.sigmoid(f32(d) @ f32(dw3) + db3)
    return recon, mean


if __name__ == "__main__":
    key = jax.random.PRNGKey(0)
    k_param, k_x = jax.random.split(key)

    params = init_params(k_param)
    prepared = prepare_params(params)

    # Small MNIST-like batch: (B, C, H, W) = (8, 1, 28, 28) -> flattens to (8, 784)
    x = jax.random.uniform(k_x, (8, 1, 28, 28), jnp.float32)

    recon, mean, log_var = jax.block_until_ready(vae_forward(x, prepared))

    # sanity check against pure-JAX reference
    ref_recon, ref_mean = _reference_forward(x, prepared)
    assert recon.shape == (8, INPUT_DIM) and recon.dtype == jnp.bfloat16
    assert mean.shape == (8, LATENT_DIM)
    assert log_var.shape == (8, 0)
    assert jnp.allclose(recon.astype(jnp.float32), ref_recon, atol=1e-2, rtol=1e-2)
    assert jnp.allclose(mean, ref_mean, atol=2e-3, rtol=2e-3)

    print("KERNEL_OK")
</pallas_src>

<mosaic_0001>
module attributes {stable_mosaic.version = 11 : i64} {
  func.func @_vae_kernel(%arg0: i32, %arg1: memref<8x784xf32, #tpu.memory_space<vmem>>, %arg2: memref<784x256xbf16, #tpu.memory_space<vmem>>, %arg3: memref<1x256xf32, #tpu.memory_space<vmem>>, %arg4: memref<256x128xbf16, #tpu.memory_space<vmem>>, %arg5: memref<1x128xf32, #tpu.memory_space<vmem>>, %arg6: memref<128x128xbf16, #tpu.memory_space<vmem>>, %arg7: memref<1x128xf32, #tpu.memory_space<vmem>>, %arg8: memref<128x128xbf16, #tpu.memory_space<vmem>>, %arg9: memref<1x128xf32, #tpu.memory_space<vmem>>, %arg10: memref<128x256xbf16, #tpu.memory_space<vmem>>, %arg11: memref<1x256xf32, #tpu.memory_space<vmem>>, %arg12: memref<256x784xbf16, #tpu.memory_space<vmem>>, %arg13: memref<1x784xf32, #tpu.memory_space<vmem>>, %arg14: memref<8x784xbf16, #tpu.memory_space<vmem>>, %arg15: memref<8x20xf32, #tpu.memory_space<vmem>>) attributes {dimension_semantics = [#tpu.dimension_semantics<parallel>], iteration_bounds = array<i64: 1>, scalar_prefetch = 0 : i64, scratch_operands = 0 : i64, tpu.core_type = #tpu.core_type<tc>, window_params = [{transform_indices = @transform_0, window_bounds = array<i64: 8, 784>}, {pipeline_mode = #tpu.pipeline_mode<synchronous>, transform_indices = @transform_1, window_bounds = array<i64: 784, 256>}, {pipeline_mode = #tpu.pipeline_mode<synchronous>, transform_indices = @transform_2, window_bounds = array<i64: 1, 256>}, {pipeline_mode = #tpu.pipeline_mode<synchronous>, transform_indices = @transform_3, window_bounds = array<i64: 256, 128>}, {pipeline_mode = #tpu.pipeline_mode<synchronous>, transform_indices = @transform_4, window_bounds = array<i64: 1, 128>}, {pipeline_mode = #tpu.pipeline_mode<synchronous>, transform_indices = @transform_5, window_bounds = array<i64: 128, 128>}, {pipeline_mode = #tpu.pipeline_mode<synchronous>, transform_indices = @transform_6, window_bounds = array<i64: 1, 128>}, {pipeline_mode = #tpu.pipeline_mode<synchronous>, transform_indices = @transform_7, window_bounds = array<i64: 128, 128>}, {pipeline_mode = #tpu.pipeline_mode<synchronous>, transform_indices = @transform_8, window_bounds = array<i64: 1, 128>}, {pipeline_mode = #tpu.pipeline_mode<synchronous>, transform_indices = @transform_9, window_bounds = array<i64: 128, 256>}, {pipeline_mode = #tpu.pipeline_mode<synchronous>, transform_indices = @transform_10, window_bounds = array<i64: 1, 256>}, {pipeline_mode = #tpu.pipeline_mode<synchronous>, transform_indices = @transform_11, window_bounds = array<i64: 256, 784>}, {pipeline_mode = #tpu.pipeline_mode<synchronous>, transform_indices = @transform_12, window_bounds = array<i64: 1, 784>}, {transform_indices = @transform_13, window_bounds = array<i64: 8, 784>}, {transform_indices = @transform_14, window_bounds = array<i64: 8, 20>}]} {
    %c0 = arith.constant 0 : index
    %c0_0 = arith.constant 0 : index
    %0 = vector.load %arg1[%c0, %c0_0] : memref<8x784xf32, #tpu.memory_space<vmem>>, vector<8x784xf32>
    %1 = arith.truncf %0 : vector<8x784xf32> to vector<8x784xbf16>
    %c0_1 = arith.constant 0 : index
    %c0_2 = arith.constant 0 : index
    %2 = vector.load %arg2[%c0_1, %c0_2] : memref<784x256xbf16, #tpu.memory_space<vmem>>, vector<784x256xbf16>
    %cst = arith.constant dense<0.000000e+00> : vector<8x256xf32>
    %3 = tpu.matmul %1, %2, %cst {dimension_numbers = #tpu.dot_dimension_numbers<[1], [0], [0], [1], [0, 0, 1, 1], [], []>} : vector<8x784xbf16>, vector<784x256xbf16>, vector<8x256xf32> -> vector<8x256xf32>
    %c0_3 = arith.constant 0 : index
    %c0_4 = arith.constant 0 : index
    %4 = vector.load %arg3[%c0_3, %c0_4] : memref<1x256xf32, #tpu.memory_space<vmem>>, vector<1x256xf32>
    %5 = vector.broadcast %4 : vector<1x256xf32> to vector<8x256xf32>
    %6 = arith.addf %3, %5 : vector<8x256xf32>
    %cst_5 = arith.constant 0.000000e+00 : f32
    %7 = vector.broadcast %cst_5 : f32 to vector<8x256xf32>
    %8 = arith.maximumf %6, %7 : vector<8x256xf32>
    %9 = arith.truncf %8 : vector<8x256xf32> to vector<8x256xbf16>
    %c0_6 = arith.constant 0 : index
    %c0_7 = arith.constant 0 : index
    %10 = vector.load %arg4[%c0_6, %c0_7] : memref<256x128xbf16, #tpu.memory_space<vmem>>, vector<256x128xbf16>
    %cst_8 = arith.constant dense<0.000000e+00> : vector<8x128xf32>
    %11 = tpu.matmul %9, %10, %cst_8 {dimension_numbers = #tpu.dot_dimension_numbers<[1], [0], [0], [1], [0, 0, 1, 1], [], []>} : vector<8x256xbf16>, vector<256x128xbf16>, vector<8x128xf32> -> vector<8x128xf32>
    %c0_9 = arith.constant 0 : index
    %c0_10 = arith.constant 0 : index
    %12 = vector.load %arg5[%c0_9, %c0_10] : memref<1x128xf32, #tpu.memory_space<vmem>>, vector<1x128xf32>
    %13 = vector.broadcast %12 : vector<1x128xf32> to vector<8x128xf32>
    %14 = arith.addf %11, %13 : vector<8x128xf32>
    %cst_11 = arith.constant 0.000000e+00 : f32
    %15 = vector.broadcast %cst_11 : f32 to vector<8x128xf32>
    %16 = arith.maximumf %14, %15 : vector<8x128xf32>
    %17 = arith.truncf %16 : vector<8x128xf32> to vector<8x128xbf16>
    %c0_12 = arith.constant 0 : index
    %c0_13 = arith.constant 0 : index
    %18 = vector.load %arg6[%c0_12, %c0_13] : memref<128x128xbf16, #tpu.memory_space<vmem>>, vector<128x128xbf16>
    %cst_14 = arith.constant dense<0.000000e+00> : vector<8x128xf32>
    %19 = tpu.matmul %17, %18, %cst_14 {dimension_numbers = #tpu.dot_dimension_numbers<[1], [0], [0], [1], [0, 0, 1, 1], [], []>} : vector<8x128xbf16>, vector<128x128xbf16>, vector<8x128xf32> -> vector<8x128xf32>
    %c0_15 = arith.constant 0 : index
    %c0_16 = arith.constant 0 : index
    %20 = vector.load %arg7[%c0_15, %c0_16] : memref<1x128xf32, #tpu.memory_space<vmem>>, vector<1x128xf32>
    %21 = vector.broadcast %20 : vector<1x128xf32> to vector<8x128xf32>
    %22 = arith.addf %19, %21 : vector<8x128xf32>
    %23 = vector.extract_strided_slice %22 {offsets = [0, 0], sizes = [8, 20], strides = [1, 1]} : vector<8x128xf32> to vector<8x20xf32>
    %c0_17 = arith.constant 0 : index
    %c0_18 = arith.constant 0 : index
    %24 = vector.load %arg15[%c0_17, %c0_18] : memref<8x20xf32, #tpu.memory_space<vmem>>, vector<8x20xf32>
    tpu.vector_store %arg15[%c0_17, %c0_18], %23 {strides = array<i32>} : memref<8x20xf32, #tpu.memory_space<vmem>>, vector<8x20xf32>,
    %25 = arith.truncf %22 : vector<8x128xf32> to vector<8x128xbf16>
    %c0_19 = arith.constant 0 : index
    %c0_20 = arith.constant 0 : index
    %26 = vector.load %arg8[%c0_19, %c0_20] : memref<128x128xbf16, #tpu.memory_space<vmem>>, vector<128x128xbf16>
    %cst_21 = arith.constant dense<0.000000e+00> : vector<8x128xf32>
    %27 = tpu.matmul %25, %26, %cst_21 {dimension_numbers = #tpu.dot_dimension_numbers<[1], [0], [0], [1], [0, 0, 1, 1], [], []>} : vector<8x128xbf16>, vector<128x128xbf16>, vector<8x128xf32> -> vector<8x128xf32>
    %c0_22 = arith.constant 0 : index
    %c0_23 = arith.constant 0 : index
    %28 = vector.load %arg9[%c0_22, %c0_23] : memref<1x128xf32, #tpu.memory_space<vmem>>, vector<1x128xf32>
    %29 = vector.broadcast %28 : vector<1x128xf32> to vector<8x128xf32>
    %30 = arith.addf %27, %29 : vector<8x128xf32>
    %cst_24 = arith.constant 0.000000e+00 : f32
    %31 = vector.broadcast %cst_24 : f32 to vector<8x128xf32>
    %32 = arith.maximumf %30, %31 : vector<8x128xf32>
    %33 = arith.truncf %32 : vector<8x128xf32> to vector<8x128xbf16>
    %c0_25 = arith.constant 0 : index
    %c0_26 = arith.constant 0 : index
    %34 = vector.load %arg10[%c0_25, %c0_26] : memref<128x256xbf16, #tpu.memory_space<vmem>>, vector<128x256xbf16>
    %cst_27 = arith.constant dense<0.000000e+00> : vector<8x256xf32>
    %35 = tpu.matmul %33, %34, %cst_27 {dimension_numbers = #tpu.dot_dimension_numbers<[1], [0], [0], [1], [0, 0, 1, 1], [], []>} : vector<8x128xbf16>, vector<128x256xbf16>, vector<8x256xf32> -> vector<8x256xf32>
    %c0_28 = arith.constant 0 : index
    %c0_29 = arith.constant 0 : index
    %36 = vector.load %arg11[%c0_28, %c0_29] : memref<1x256xf32, #tpu.memory_space<vmem>>, vector<1x256xf32>
    %37 = vector.broadcast %36 : vector<1x256xf32> to vector<8x256xf32>
    %38 = arith.addf %35, %37 : vector<8x256xf32>
    %cst_30 = arith.constant 0.000000e+00 : f32
    %39 = vector.broadcast %cst_30 : f32 to vector<8x256xf32>
    %40 = arith.maximumf %38, %39 : vector<8x256xf32>
    %41 = arith.truncf %40 : vector<8x256xf32> to vector<8x256xbf16>
    %c0_31 = arith.constant 0 : index
    %c0_32 = arith.constant 0 : index
    %42 = vector.load %arg12[%c0_31, %c0_32] : memref<256x784xbf16, #tpu.memory_space<vmem>>, vector<256x784xbf16>
    %cst_33 = arith.constant dense<0.000000e+00> : vector<8x784xf32>
    %43 = tpu.matmul %41, %42, %cst_33 {dimension_numbers = #tpu.dot_dimension_numbers<[1], [0], [0], [1], [0, 0, 1, 1], [], []>} : vector<8x256xbf16>, vector<256x784xbf16>, vector<8x784xf32> -> vector<8x784xf32>
    %c0_34 = arith.constant 0 : index
    %c0_35 = arith.constant 0 : index
    %44 = vector.load %arg13[%c0_34, %c0_35] : memref<1x784xf32, #tpu.memory_space<vmem>>, vector<1x784xf32>
    %45 = vector.broadcast %44 : vector<1x784xf32> to vector<8x784xf32>
    %46 = arith.addf %43, %45 : vector<8x784xf32>
    %47 = arith.negf %46 : vector<8x784xf32>
    %48 = math.exp %47 : vector<8x784xf32>
    %cst_36 = arith.constant 1.000000e+00 : f32
    %49 = vector.broadcast %cst_36 : f32 to vector<8x784xf32>
    %50 = arith.addf %49, %48 : vector<8x784xf32>
    %51 = arith.divf %49, %50 : vector<8x784xf32>
    %52 = arith.truncf %51 : vector<8x784xf32> to vector<8x784xbf16>
    %c0_37 = arith.constant 0 : index
    %c0_38 = arith.constant 0 : index
    %53 = vector.load %arg14[%c0_37, %c0_38] : memref<8x784xbf16, #tpu.memory_space<vmem>>, vector<8x784xbf16>
    tpu.vector_store %arg14[%c0_37, %c0_38], %52 {strides = array<i32>} : memref<8x784xbf16, #tpu.memory_space<vmem>>, vector<8x784xbf16>,
    return
  }
  func.func @transform_0(%arg0: i32) -> (i32, i32) {
    %c0_i32 = arith.constant 0 : i32
    %c0_i32_0 = arith.constant 0 : i32
    return %arg0, %c0_i32 : i32, i32
  }
  func.func @transform_1(%arg0: i32) -> (i32, i32) {
    %c0_i32 = arith.constant 0 : i32
    %c0_i32_0 = arith.constant 0 : i32
    %c0_i32_1 = arith.constant 0 : i32
    return %c0_i32, %c0_i32_0 : i32, i32
  }
  func.func @transform_2(%arg0: i32) -> (i32, i32) {
    %c0_i32 = arith.constant 0 : i32
    %c0_i32_0 = arith.constant 0 : i32
    %c0_i32_1 = arith.constant 0 : i32
    return %c0_i32, %c0_i32_0 : i32, i32
  }
  func.func @transform_3(%arg0: i32) -> (i32, i32) {
    %c0_i32 = arith.constant 0 : i32
    %c0_i32_0 = arith.constant 0 : i32
    %c0_i32_1 = arith.constant 0 : i32
    return %c0_i32, %c0_i32_0 : i32, i32
  }
  func.func @transform_4(%arg0: i32) -> (i32, i32) {
    %c0_i32 = arith.constant 0 : i32
    %c0_i32_0 = arith.constant 0 : i32
    %c0_i32_1 = arith.constant 0 : i32
    return %c0_i32, %c0_i32_0 : i32, i32
  }
  func.func @transform_5(%arg0: i32) -> (i32, i32) {
    %c0_i32 = arith.constant 0 : i32
    %c0_i32_0 = arith.constant 0 : i32
    %c0_i32_1 = arith.constant 0 : i32
    return %c0_i32, %c0_i32_0 : i32, i32
  }
  func.func @transform_6(%arg0: i32) -> (i32, i32) {
    %c0_i32 = arith.constant 0 : i32
    %c0_i32_0 = arith.constant 0 : i32
    %c0_i32_1 = arith.constant 0 : i32
    return %c0_i32, %c0_i32_0 : i32, i32
  }
  func.func @transform_7(%arg0: i32) -> (i32, i32) {
    %c0_i32 = arith.constant 0 : i32
    %c0_i32_0 = arith.constant 0 : i32
    %c0_i32_1 = arith.constant 0 : i32
    return %c0_i32, %c0_i32_0 : i32, i32
  }
  func.func @transform_8(%arg0: i32) -> (i32, i32) {
    %c0_i32 = arith.constant 0 : i32
    %c0_i32_0 = arith.constant 0 : i32
    %c0_i32_1 = arith.constant 0 : i32
    return %c0_i32, %c0_i32_0 : i32, i32
  }
  func.func @transform_9(%arg0: i32) -> (i32, i32) {
    %c0_i32 = arith.constant 0 : i32
    %c0_i32_0 = arith.constant 0 : i32
    %c0_i32_1 = arith.constant 0 : i32
    return %c0_i32, %c0_i32_0 : i32, i32
  }
  func.func @transform_10(%arg0: i32) -> (i32, i32) {
    %c0_i32 = arith.constant 0 : i32
    %c0_i32_0 = arith.constant 0 : i32
    %c0_i32_1 = arith.constant 0 : i32
    return %c0_i32, %c0_i32_0 : i32, i32
  }
  func.func @transform_11(%arg0: i32) -> (i32, i32) {
    %c0_i32 = arith.constant 0 : i32
    %c0_i32_0 = arith.constant 0 : i32
    %c0_i32_1 = arith.constant 0 : i32
    return %c0_i32, %c0_i32_0 : i32, i32
  }
  func.func @transform_12(%arg0: i32) -> (i32, i32) {
    %c0_i32 = arith.constant 0 : i32
    %c0_i32_0 = arith.constant 0 : i32
    %c0_i32_1 = arith.constant 0 : i32
    return %c0_i32, %c0_i32_0 : i32, i32
  }
  func.func @transform_13(%arg0: i32) -> (i32, i32) {
    %c0_i32 = arith.constant 0 : i32
    %c0_i32_0 = arith.constant 0 : i32
    return %arg0, %c0_i32 : i32, i32
  }
  func.func @transform_14(%arg0: i32) -> (i32, i32) {
    %c0_i32 = arith.constant 0 : i32
    %c0_i32_0 = arith.constant 0 : i32
    return %arg0, %c0_i32 : i32, i32
  }
}

</mosaic_0001>

<llo_original>
// kernel: vae_forward.1
$region0: #{vae_forward.1}
  #allocation0 [shape = 'u32[]', space=smem, size = 0x4, offset = 0x4, fixed_abs, tag = 'smem constant byte address 0x4 - core index']
  #allocation1 [shape = 'u32[144,128]{1,0:T(1,128)}', space=vmem, size = 0x12000, scoped, tag = 'internal scratch']
  %s0 = inlined_call_operand.vmem [shape: f32[8,784], index: 0, kind: input, shape index: {}]
  %s1 = inlined_call_operand.vmem [shape: bf16[784,256], index: 1, kind: input, shape index: {}]
  %s2 = inlined_call_operand.vmem [shape: f32[1,256], index: 2, kind: input, shape index: {}]
  %s3 = inlined_call_operand.vmem [shape: bf16[256,128], index: 3, kind: input, shape index: {}]
  %s4 = inlined_call_operand.vmem [shape: f32[1,128], index: 4, kind: input, shape index: {}]
  %s5 = inlined_call_operand.vmem [shape: bf16[128,128], index: 5, kind: input, shape index: {}]
  %s6 = inlined_call_operand.vmem [shape: f32[1,128], index: 6, kind: input, shape index: {}]
  %s7 = inlined_call_operand.vmem [shape: bf16[128,128], index: 7, kind: input, shape index: {}]
  %s8 = inlined_call_operand.vmem [shape: f32[1,128], index: 8, kind: input, shape index: {}]
  %s9 = inlined_call_operand.vmem [shape: bf16[128,256], index: 9, kind: input, shape index: {}]
  %s10 = inlined_call_operand.vmem [shape: f32[1,256], index: 10, kind: input, shape index: {}]
  %s11 = inlined_call_operand.vmem [shape: bf16[256,784], index: 11, kind: input, shape index: {}]
  %s12 = inlined_call_operand.vmem [shape: f32[1,784], index: 12, kind: input, shape index: {}]
  %s13 = inlined_call_operand.hbm [shape: bf16[8,784], index: 13, kind: output, shape index: {0}]
  %s14 = inlined_call_operand.hbm [shape: f32[8,20], index: 14, kind: output, shape index: {1}]
  %15 = xla_tuple %s13, %s14
  %s16 = sld [smem:[#allocation0]]
  $region70: #{vae_forward.1} parent=0
    _
  %s18 = ssub.s32 1, %s16
  %s19 = scalar_select 0, %s18, %s16
  $region1: #{vae_forward.1} parent=0
    #allocation2 [shape = 'u8[14336]{0}', space=vmem, size = 0x3800, scoped, tag = 'output window, operand 0, single buffered']
    #allocation3 [shape = 's32[1]{0}', space=sflag, size = 0x4, scoped, tag = 'scoped memory for vae_forward.1']
    #allocation4 [shape = 'u8[4096]{0}', space=vmem, size = 0x1000, scoped, tag = 'output window, operand 1, single buffered']
    #allocation5 [shape = 's32[1]{0}', space=sflag, size = 0x4, scoped, tag = 'scoped memory for vae_forward.1']
    %20 = vsyncpa [#allocation3], 0
    %21 = vsyncpa [#allocation5], 0
    // Predicated region
    $region2: #{vae_forward.1} parent=1 // pred_check
      _
    $region3: #{vae_forward.1} parent=1 // pred_check_branch
      %23 = sbr.rel (0) target = $region5
    $region4: #{vae_forward.1} parent=1 // pred_region
      _
    $region5: #{vae_forward.1} parent=1 // pred_fallthru
      _
    // Predicated region
    $region6: #{vae_forward.1} parent=1 // pred_check
      _
    $region7: #{vae_forward.1} parent=1 // pred_check_branch
      %25 = sbr.rel (0) target = $region9
    $region8: #{vae_forward.1} parent=1 // pred_region
      _
    $region9: #{vae_forward.1} parent=1 // pred_fallthru
      _
    // Predicated region
    $region10: #{vae_forward.1} parent=1 // pred_check
      _
    $region11: #{vae_forward.1} parent=1 // pred_check_branch
      %27 = sbr.rel (0) target = $region13
    $region12: #{vae_forward.1} parent=1 // pred_region
      _
    $region13: #{vae_forward.1} parent=1 // pred_fallthru
      _
    // Predicated region
    $region14: #{vae_forward.1} parent=1 // pred_check
      _
    $region15: #{vae_forward.1} parent=1 // pred_check_branch
      %29 = sbr.rel (0) target = $region17
    $region16: #{vae_forward.1} parent=1 // pred_region
      _
    $region17: #{vae_forward.1} parent=1 // pred_fallthru
      _
    // Predicated region
    $region18: #{vae_forward.1} parent=1 // pred_check
      _
    $region19: #{vae_forward.1} parent=1 // pred_check_branch
      %31 = sbr.rel (0) target = $region21
    $region20: #{vae_forward.1} parent=1 // pred_region
      _
    $region21: #{vae_forward.1} parent=1 // pred_fallthru
      _
    // Predicated region
    $region22: #{vae_forward.1} parent=1 // pred_check
      _
    $region23: #{vae_forward.1} parent=1 // pred_check_branch
      %33 = sbr.rel (0) target = $region25
    $region24: #{vae_forward.1} parent=1 // pred_region
      _
    $region25: #{vae_forward.1} parent=1 // pred_fallthru
      _
    // Predicated region
    $region26: #{vae_forward.1} parent=1 // pred_check
      _
    $region27: #{vae_forward.1} parent=1 // pred_check_branch
      %35 = sbr.rel (0) target = $region29
    $region28: #{vae_forward.1} parent=1 // pred_region
      _
    $region29: #{vae_forward.1} parent=1 // pred_fallthru
      _
    // Predicated region
    $region30: #{vae_forward.1} parent=1 // pred_check
      _
    $region31: #{vae_forward.1} parent=1 // pred_check_branch
      %37 = sbr.rel (0) target = $region33
    $region32: #{vae_forward.1} parent=1 // pred_region
      _
    $region33: #{vae_forward.1} parent=1 // pred_fallthru
      _
    // Predicated region
    $region34: #{vae_forward.1} parent=1 // pred_check
      _
    $region35: #{vae_forward.1} parent=1 // pred_check_branch
      %39 = sbr.rel (0) target = $region37
    $region36: #{vae_forward.1} parent=1 // pred_region
      _
    $region37: #{vae_forward.1} parent=1 // pred_fallthru
      _
    // Predicated region
    $region38: #{vae_forward.1} parent=1 // pred_check
      _
    $region39: #{vae_forward.1} parent=1 // pred_check_branch
      %41 = sbr.rel (0) target = $region41
    $region40: #{vae_forward.1} parent=1 // pred_region
      _
    $region41: #{vae_forward.1} parent=1 // pred_fallthru
      _
    // Predicated region
    $region42: #{vae_forward.1} parent=1 // pred_check
      _
    $region43: #{vae_forward.1} parent=1 // pred_check_branch
      %43 = sbr.rel (0) target = $region45
    $region44: #{vae_forward.1} parent=1 // pred_region
      _
    $region45: #{vae_forward.1} parent=1 // pred_fallthru
      _
    // Predicated region
    $region46: #{vae_forward.1} parent=1 // pred_check
      _
    $region47: #{vae_forward.1} parent=1 // pred_check_branch
      %45 = sbr.rel (0) target = $region49
    $region48: #{vae_forward.1} parent=1 // pred_region
      _
    $region49: #{vae_forward.1} parent=1 // pred_fallthru
      _
    // Predicated region
    $region50: #{vae_forward.1} parent=1 // pred_check
      _
    $region51: #{vae_forward.1} parent=1 // pred_check_branch
      %47 = sbr.rel (0) target = $region53
    $region52: #{vae_forward.1} parent=1 // pred_region
      _
    $region53: #{vae_forward.1} parent=1 // pred_fallthru
      _
    %v49 = vld [vmem:[%s0] sm:$0xff]
    %v50 = vld [vmem:[%s0 + $0x8] sm:$0xff]
    %v51 = vld [vmem:[%s0 + $0x10] sm:$0xff]
    %v52 = vld [vmem:[%s0 + $0x18] sm:$0xff]
    %v53 = vld [vmem:[%s0 + $0x20] sm:$0xff]
    %v54 = vld [vmem:[%s0 + $0x28] sm:$0xff]
    %v55 = vld [vmem:[%s0 + $0x30] sm:$0xff]
    %v56 = vpack.c.bf16 %v49, %v49
    %v57 = vpack.c.bf16 %v50, %v50
    %v58 = vpack.c.bf16 %v51, %v51
    %v59 = vpack.c.bf16 %v52, %v52
    %v60 = vpack.c.bf16 %v53, %v53
    %v61 = vpack.c.bf16 %v54, %v54
    %v62 = vpack.c.bf16 %v55, %v55
    %v63 = vld [vmem:[%s1] sm:$0xff]
    %v64 = vld [vmem:[%s1 + $0x8] sm:$0xff]
    %v65 = vld [vmem:[%s1 + $0x10] sm:$0xff]
    %v66 = vld [vmem:[%s1 + $0x18] sm:$0xff]
    %v67 = vld [vmem:[%s1 + $0x20] sm:$0xff]
    %v68 = vld [vmem:[%s1 + $0x28] sm:$0xff]
    %v69 = vld [vmem:[%s1 + $0x30] sm:$0xff]
    %v70 = vld [vmem:[%s1 + $0x38] sm:$0xff]
    %v71 = vld [vmem:[%s1 + $0x40] sm:$0xff]
    %v72 = vld [vmem:[%s1 + $0x48] sm:$0xff]
    %v73 = vld [vmem:[%s1 + $0x50] sm:$0xff]
    %v74 = vld [vmem:[%s1 + $0x58] sm:$0xff]
    %v75 = vld [vmem:[%s1 + $0x60] sm:$0xff]
    %v76 = vld [vmem:[%s1 + $0x68] sm:$0xff]
    %v77 = vld [vmem:[%s1 + $0x70] sm:$0xff]
    %v78 = vld [vmem:[%s1 + $0x78] sm:$0xff]
    %v79 = vld [vmem:[%s1 + $0x80] sm:$0xff]
    %v80 = vld [vmem:[%s1 + $0x88] sm:$0xff]
    %v81 = vld [vmem:[%s1 + $0x90] sm:$0xff]
    %v82 = vld [vmem:[%s1 + $0x98] sm:$0xff]
    %v83 = vld [vmem:[%s1 + $0xa0] sm:$0xff]
    %v84 = vld [vmem:[%s1 + $0xa8] sm:$0xff]
    %v85 = vld [vmem:[%s1 + $0xb0] sm:$0xff]
    %v86 = vld [vmem:[%s1 + $0xb8] sm:$0xff]
    %v87 = vld [vmem:[%s1 + $0xc0] sm:$0xff]
    %v88 = vld [vmem:[%s1 + $0xc8] sm:$0xff]
    %v89 = vld [vmem:[%s1 + $0xd0] sm:$0xff]
    %v90 = vld [vmem:[%s1 + $0xd8] sm:$0xff]
    %v91 = vld [vmem:[%s1 + $0xe0] sm:$0xff]
    %v92 = vld [vmem:[%s1 + $0xe8] sm:$0xff]
    %v93 = vld [vmem:[%s1 + $0xf0] sm:$0xff]
    %v94 = vld [vmem:[%s1 + $0xf8] sm:$0xff]
    %v95 = vld [vmem:[%s1 + $0x100] sm:$0xff]
    %v96 = vld [vmem:[%s1 + $0x108] sm:$0xff]
    %v97 = vld [vmem:[%s1 + $0x110] sm:$0xff]
    %v98 = vld [vmem:[%s1 + $0x118] sm:$0xff]
    %v99 = vld [vmem:[%s1 + $0x120] sm:$0xff]
    %v100 = vld [vmem:[%s1 + $0x128] sm:$0xff]
    %v101 = vld [vmem:[%s1 + $0x130] sm:$0xff]
    %v102 = vld [vmem:[%s1 + $0x138] sm:$0xff]
    %v103 = vld [vmem:[%s1 + $0x140] sm:$0xff]
    %v104 = vld [vmem:[%s1 + $0x148] sm:$0xff]
    %v105 = vld [vmem:[%s1 + $0x150] sm:$0xff]
    %v106 = vld [vmem:[%s1 + $0x158] sm:$0xff]
    %v107 = vld [vmem:[%s1 + $0x160] sm:$0xff]
    %v108 = vld [vmem:[%s1 + $0x168] sm:$0xff]
    %v109 = vld [vmem:[%s1 + $0x170] sm:$0xff]
    %v110 = vld [vmem:[%s1 + $0x178] sm:$0xff]
    %v111 = vld [vmem:[%s1 + $0x180] sm:$0xff]
    %v112 = vld [vmem:[%s1 + $0x188] sm:$0xff]
    %v113 = vld [vmem:[%s1 + $0x190] sm:$0xff]
    %v114 = vld [vmem:[%s1 + $0x198] sm:$0xff]
    %v115 = vld [vmem:[%s1 + $0x1a0] sm:$0xff]
    %v116 = vld [vmem:[%s1 + $0x1a8] sm:$0xff]
    %v117 = vld [vmem:[%s1 + $0x1b0] sm:$0xff]
    %v118 = vld [vmem:[%s1 + $0x1b8] sm:$0xff]
    %v119 = vld [vmem:[%s1 + $0x1c0] sm:$0xff]
    %v120 = vld [vmem:[%s1 + $0x1c8] sm:$0xff]
    %v121 = vld [vmem:[%s1 + $0x1d0] sm:$0xff]
    %v122 = vld [vmem:[%s1 + $0x1d8] sm:$0xff]
    %v123 = vld [vmem:[%s1 + $0x1e0] sm:$0xff]
    %v124 = vld [vmem:[%s1 + $0x1e8] sm:$0xff]
    %v125 = vld [vmem:[%s1 + $0x1f0] sm:$0xff]
    %v126 = vld [vmem:[%s1 + $0x1f8] sm:$0xff]
    %v127 = vld [vmem:[%s1 + $0x200] sm:$0xff]
    %v128 = vld [vmem:[%s1 + $0x208] sm:$0xff]
    %v129 = vld [vmem:[%s1 + $0x210] sm:$0xff]
    %v130 = vld [vmem:[%s1 + $0x218] sm:$0xff]
    %v131 = vld [vmem:[%s1 + $0x220] sm:$0xff]
    %v132 = vld [vmem:[%s1 + $0x228] sm:$0xff]
    %v133 = vld [vmem:[%s1 + $0x230] sm:$0xff]
    %v134 = vld [vmem:[%s1 + $0x238] sm:$0xff]
    %v135 = vld [vmem:[%s1 + $0x240] sm:$0xff]
    %v136 = vld [vmem:[%s1 + $0x248] sm:$0xff]
    %v137 = vld [vmem:[%s1 + $0x250] sm:$0xff]
    %v138 = vld [vmem:[%s1 + $0x258] sm:$0xff]
    %v139 = vld [vmem:[%s1 + $0x260] sm:$0xff]
    %v140 = vld [vmem:[%s1 + $0x268] sm:$0xff]
    %v141 = vld [vmem:[%s1 + $0x270] sm:$0xff]
    %v142 = vld [vmem:[%s1 + $0x278] sm:$0xff]
    %v143 = vld [vmem:[%s1 + $0x280] sm:$0xff]
    %v144 = vld [vmem:[%s1 + $0x288] sm:$0xff]
    %v145 = vld [vmem:[%s1 + $0x290] sm:$0xff]
    %v146 = vld [vmem:[%s1 + $0x298] sm:$0xff]
    %v147 = vld [vmem:[%s1 + $0x2a0] sm:$0xff]
    %v148 = vld [vmem:[%s1 + $0x2a8] sm:$0xff]
    %v149 = vld [vmem:[%s1 + $0x2b0] sm:$0xff]
    %v150 = vld [vmem:[%s1 + $0x2b8] sm:$0xff]
    %v151 = vld [vmem:[%s1 + $0x2c0] sm:$0xff]
    %v152 = vld [vmem:[%s1 + $0x2c8] sm:$0xff]
    %v153 = vld [vmem:[%s1 + $0x2d0] sm:$0xff]
    %v154 = vld [vmem:[%s1 + $0x2d8] sm:$0xff]
    %v155 = vld [vmem:[%s1 + $0x2e0] sm:$0xff]
    %v156 = vld [vmem:[%s1 + $0x2e8] sm:$0xff]
    %v157 = vld [vmem:[%s1 + $0x2f0] sm:$0xff]
    %v158 = vld [vmem:[%s1 + $0x2f8] sm:$0xff]
    %v159 = vld [vmem:[%s1 + $0x300] sm:$0xff]
    %v160 = vld [vmem:[%s1 + $0x308] sm:$0xff]
    %v161 = vld [vmem:[%s2] sm:$0x3]
    %v163 = vlaneseq
    %v164 = vshrl.u32 %v163, 7
    %v165 = vsub.s32 0, %v164
    %v166 = vrot.slane %v161, %v165
    %v167 = vlaneseq
    %v168 = vshrl.u32 %v167, 7
    %v169 = vsub.s32 1, %v168
    %v170 = vrot.slane %v161, %v169
    %v271 = vunpack.c.l.b16 %v63
    %v272 = vunpack.c.h.b16 %v63
    %v273 = vunpack.c.l.b16 %v64
    %v274 = vunpack.c.h.b16 %v64
    %v275 = vunpack.c.l.b16 %v65
    %v276 = vunpack.c.h.b16 %v65
    %v277 = vunpack.c.l.b16 %v66
    %v278 = vunpack.c.h.b16 %v66
    %v279 = vunpack.c.l.b16 %v67
    %v280 = vunpack.c.h.b16 %v67
    %v281 = vunpack.c.l.b16 %v68
    %v282 = vunpack.c.h.b16 %v68
    %v283 = vunpack.c.l.b16 %v69
    %v284 = vunpack.c.h.b16 %v69
    %v285 = vunpack.c.l.b16 %v70
    %v286 = vunpack.c.h.b16 %v70
    %v287 = vunpack.c.l.b16 %v71
    %v288 = vunpack.c.h.b16 %v71
    %v289 = vunpack.c.l.b16 %v72
    %v290 = vunpack.c.h.b16 %v72
    %v291 = vunpack.c.l.b16 %v73
    %v292 = vunpack.c.h.b16 %v73
    %v293 = vunpack.c.l.b16 %v74
    %v294 = vunpack.c.h.b16 %v74
    %v295 = vunpack.c.l.b16 %v75
    %v296 = vunpack.c.h.b16 %v75
    %v297 = vunpack.c.l.b16 %v76
    %v298 = vunpack.c.h.b16 %v76
    %v299 = vunpack.c.l.b16 %v77
    %v300 = vunpack.c.h.b16 %v77
    %v301 = vunpack.c.l.b16 %v78
    %v302 = vunpack.c.h.b16 %v78
    %v303 = vunpack.c.l.b16 %v79
    %v304 = vunpack.c.h.b16 %v79
    %v305 = vunpack.c.l.b16 %v80
    %v306 = vunpack.c.h.b16 %v80
    %v307 = vunpack.c.l.b16 %v81
    %v308 = vunpack.c.h.b16 %v81
    %v309 = vunpack.c.l.b16 %v82
    %v310 = vunpack.c.h.b16 %v82
    %v311 = vunpack.c.l.b16 %v83
    %v312 = vunpack.c.h.b16 %v83
    %v313 = vunpack.c.l.b16 %v84
    %v314 = vunpack.c.h.b16 %v84
    %v315 = vunpack.c.l.b16 %v85
    %v316 = vunpack.c.h.b16 %v85
    %v317 = vunpack.c.l.b16 %v86
    %v318 = vunpack.c.h.b16 %v86
    %v319 = vunpack.c.l.b16 %v87
    %v320 = vunpack.c.h.b16 %v87
    %v321 = vunpack.c.l.b16 %v88
    %v322 = vunpack.c.h.b16 %v88
    %v323 = vunpack.c.l.b16 %v89
    %v324 = vunpack.c.h.b16 %v89
    %v325 = vunpack.c.l.b16 %v90
    %v326 = vunpack.c.h.b16 %v90
    %v327 = vunpack.c.l.b16 %v91
    %v328 = vunpack.c.h.b16 %v91
    %v329 = vunpack.c.l.b16 %v92
    %v330 = vunpack.c.h.b16 %v92
    %v331 = vunpack.c.l.b16 %v93
    %v332 = vunpack.c.h.b16 %v93
    %v333 = vunpack.c.l.b16 %v94
    %v334 = vunpack.c.h.b16 %v94
    %v335 = vunpack.c.l.b16 %v95
    %v336 = vunpack.c.h.b16 %v95
    %v337 = vunpack.c.l.b16 %v96
    %v338 = vunpack.c.h.b16 %v96
    %v339 = vunpack.c.l.b16 %v97
    %v340 = vunpack.c.h.b16 %v97
    %v341 = vunpack.c.l.b16 %v98
    %v342 = vunpack.c.h.b16 %v98
    %v343 = vunpack.c.l.b16 %v99
    %v344 = vunpack.c.h.b16 %v99
    %v345 = vunpack.c.l.b16 %v100
    %v346 = vunpack.c.h.b16 %v100
    %v347 = vunpack.c.l.b16 %v101
    %v348 = vunpack.c.h.b16 %v101
    %v349 = vunpack.c.l.b16 %v102
    %v350 = vunpack.c.h.b16 %v102
    %v351 = vunpack.c.l.b16 %v103
    %v352 = vunpack.c.h.b16 %v103
    %v353 = vunpack.c.l.b16 %v104
    %v354 = vunpack.c.h.b16 %v104
    %v355 = vunpack.c.l.b16 %v105
    %v356 = vunpack.c.h.b16 %v105
    %v357 = vunpack.c.l.b16 %v106
    %v358 = vunpack.c.h.b16 %v106
    %v359 = vunpack.c.l.b16 %v107
    %v360 = vunpack.c.h.b16 %v107
    %v361 = vunpack.c.l.b16 %v108
    %v362 = vunpack.c.h.b16 %v108
    %v363 = vunpack.c.l.b16 %v109
    %v364 = vunpack.c.h.b16 %v109
    %v365 = vunpack.c.l.b16 %v110
    %v366 = vunpack.c.h.b16 %v110
    %v367 = vunpack.c.l.b16 %v111
    %v368 = vunpack.c.h.b16 %v111
    %v369 = vunpack.c.l.b16 %v112
    %v370 = vunpack.c.h.b16 %v112
    %v371 = vunpack.c.l.b16 %v113
    %v372 = vunpack.c.h.b16 %v113
    %v373 = vunpack.c.l.b16 %v114
    %v374 = vunpack.c.h.b16 %v114
    %v375 = vunpack.c.l.b16 %v115
    %v376 = vunpack.c.h.b16 %v115
    %v377 = vunpack.c.l.b16 %v116
    %v378 = vunpack.c.h.b16 %v116
    %v379 = vunpack.c.l.b16 %v117
    %v380 = vunpack.c.h.b16 %v117
    %v381 = vunpack.c.l.b16 %v118
    %v382 = vunpack.c.h.b16 %v118
    %v383 = vunpack.c.l.b16 %v119
    %v384 = vunpack.c.h.b16 %v119
    %v385 = vunpack.c.l.b16 %v120
    %v386 = vunpack.c.h.b16 %v120
    %v387 = vunpack.c.l.b16 %v121
    %v388 = vunpack.c.h.b16 %v121
    %v389 = vunpack.c.l.b16 %v122
    %v390 = vunpack.c.h.b16 %v122
    %v391 = vunpack.c.l.b16 %v123
    %v392 = vunpack.c.h.b16 %v123
    %v393 = vunpack.c.l.b16 %v124
    %v394 = vunpack.c.h.b16 %v124
    %v395 = vunpack.c.l.b16 %v125
    %v396 = vunpack.c.h.b16 %v125
    %v397 = vunpack.c.l.b16 %v126
    %v398 = vunpack.c.h.b16 %v126
    %v399 = vunpack.c.l.b16 %v127
    %v400 = vunpack.c.h.b16 %v127
    %v401 = vunpack.c.l.b16 %v128
    %v402 = vunpack.c.h.b16 %v128
    %v403 = vunpack.c.l.b16 %v129
    %v404 = vunpack.c.h.b16 %v129
    %v405 = vunpack.c.l.b16 %v130
    %v406 = vunpack.c.h.b16 %v130
    %v407 = vunpack.c.l.b16 %v131
    %v408 = vunpack.c.h.b16 %v131
    %v409 = vunpack.c.l.b16 %v132
    %v410 = vunpack.c.h.b16 %v132
    %v411 = vunpack.c.l.b16 %v133
    %v412 = vunpack.c.h.b16 %v133
    %v413 = vunpack.c.l.b16 %v134
    %v414 = vunpack.c.h.b16 %v134
    %v415 = vunpack.c.l.b16 %v135
    %v416 = vunpack.c.h.b16 %v135
    %v417 = vunpack.c.l.b16 %v136
    %v418 = vunpack.c.h.b16 %v136
    %v419 = vunpack.c.l.b16 %v137
    %v420 = vunpack.c.h.b16 %v137
    %v421 = vunpack.c.l.b16 %v138
    %v422 = vunpack.c.h.b16 %v138
    %v423 = vunpack.c.l.b16 %v139
    %v424 = vunpack.c.h.b16 %v139
    %v425 = vunpack.c.l.b16 %v140
    %v426 = vunpack.c.h.b16 %v140
    %v427 = vunpack.c.l.b16 %v141
    %v428 = vunpack.c.h.b16 %v141
    %v429 = vunpack.c.l.b16 %v142
    %v430 = vunpack.c.h.b16 %v142
    %v431 = vunpack.c.l.b16 %v143
    %v432 = vunpack.c.h.b16 %v143
    %v433 = vunpack.c.l.b16 %v144
    %v434 = vunpack.c.h.b16 %v144
    %v435 = vunpack.c.l.b16 %v145
    %v436 = vunpack.c.h.b16 %v145
    %v437 = vunpack.c.l.b16 %v146
    %v438 = vunpack.c.h.b16 %v146
    %v439 = vunpack.c.l.b16 %v147
    %v440 = vunpack.c.h.b16 %v147
    %v441 = vunpack.c.l.b16 %v148
    %v442 = vunpack.c.h.b16 %v148
    %v443 = vunpack.c.l.b16 %v149
    %v444 = vunpack.c.h.b16 %v149
    %v445 = vunpack.c.l.b16 %v150
    %v446 = vunpack.c.h.b16 %v150
    %v447 = vunpack.c.l.b16 %v151
    %v448 = vunpack.c.h.b16 %v151
    %v449 = vunpack.c.l.b16 %v152
    %v450 = vunpack.c.h.b16 %v152
    %v451 = vunpack.c.l.b16 %v153
    %v452 = vunpack.c.h.b16 %v153
    %v453 = vunpack.c.l.b16 %v154
    %v454 = vunpack.c.h.b16 %v154
    %v455 = vunpack.c.l.b16 %v155
    %v456 = vunpack.c.h.b16 %v155
    %v457 = vunpack.c.l.b16 %v156
    %v458 = vunpack.c.h.b16 %v156
    %v459 = vunpack.c.l.b16 %v157
    %v460 = vunpack.c.h.b16 %v157
    %v461 = vunpack.c.l.b16 %v158
    %v462 = vunpack.c.h.b16 %v158
    %v463 = vunpack.c.l.b16 %v159
    %v464 = vunpack.c.h.b16 %v159
    %v465 = vunpack.c.l.b16 %v160
    %v466 = vunpack.c.h.b16 %v160
    %v467 = vpack.c.b16 %v273, %v271
    %v468 = vpack.c.b16 %v274, %v272
    %v469 = vpack.c.b16 %v277, %v275
    %v470 = vpack.c.b16 %v278, %v276
    %v471 = vpack.c.b16 %v281, %v279
    %v472 = vpack.c.b16 %v282, %v280
    %v473 = vpack.c.b16 %v285, %v283
    %v474 = vpack.c.b16 %v286, %v284
    %v475 = vpack.c.b16 %v289, %v287
    %v476 = vpack.c.b16 %v290, %v288
    %v477 = vpack.c.b16 %v293, %v291
    %v478 = vpack.c.b16 %v294, %v292
    %v479 = vpack.c.b16 %v297, %v295
    %v480 = vpack.c.b16 %v298, %v296
    %v481 = vpack.c.b16 %v301, %v299
    %v482 = vpack.c.b16 %v302, %v300
    %v483 = vpack.c.b16 %v305, %v303
    %v484 = vpack.c.b16 %v306, %v304
    %v485 = vpack.c.b16 %v309, %v307
    %v486 = vpack.c.b16 %v310, %v308
    %v487 = vpack.c.b16 %v313, %v311
    %v488 = vpack.c.b16 %v314, %v312
    %v489 = vpack.c.b16 %v317, %v315
    %v490 = vpack.c.b16 %v318, %v316
    %v491 = vpack.c.b16 %v321, %v319
    %v492 = vpack.c.b16 %v322, %v320
    %v493 = vpack.c.b16 %v325, %v323
    %v494 = vpack.c.b16 %v326, %v324
    %v495 = vpack.c.b16 %v329, %v327
    %v496 = vpack.c.b16 %v330, %v328
    %v497 = vpack.c.b16 %v333, %v331
    %v498 = vpack.c.b16 %v334, %v332
    %v499 = vpack.c.b16 %v337, %v335
    %v500 = vpack.c.b16 %v338, %v336
    %v501 = vpack.c.b16 %v341, %v339
    %v502 = vpack.c.b16 %v342, %v340
    %v503 = vpack.c.b16 %v345, %v343
    %v504 = vpack.c.b16 %v346, %v344
    %v505 = vpack.c.b16 %v349, %v347
    %v506 = vpack.c.b16 %v350, %v348
    %v507 = vpack.c.b16 %v353, %v351
    %v508 = vpack.c.b16 %v354, %v352
    %v509 = vpack.c.b16 %v357, %v355
    %v510 = vpack.c.b16 %v358, %v356
    %v511 = vpack.c.b16 %v361, %v359
    %v512 = vpack.c.b16 %v362, %v360
    %v513 = vpack.c.b16 %v365, %v363
    %v514 = vpack.c.b16 %v366, %v364
    %v515 = vpack.c.b16 %v369, %v367
    %v516 = vpack.c.b16 %v370, %v368
    %v517 = vpack.c.b16 %v373, %v371
    %v518 = vpack.c.b16 %v374, %v372
    %v519 = vpack.c.b16 %v377, %v375
    %v520 = vpack.c.b16 %v378, %v376
    %v521 = vpack.c.b16 %v381, %v379
    %v522 = vpack.c.b16 %v382, %v380
    %v523 = vpack.c.b16 %v385, %v383
    %v524 = vpack.c.b16 %v386, %v384
    %v525 = vpack.c.b16 %v389, %v387
    %v526 = vpack.c.b16 %v390, %v388
    %v527 = vpack.c.b16 %v393, %v391
    %v528 = vpack.c.b16 %v394, %v392
    %v529 = vpack.c.b16 %v397, %v395
    %v530 = vpack.c.b16 %v398, %v396
    %v531 = vpack.c.b16 %v401, %v399
    %v532 = vpack.c.b16 %v402, %v400
    %v533 = vpack.c.b16 %v405, %v403
    %v534 = vpack.c.b16 %v406, %v404
    %v535 = vpack.c.b16 %v409, %v407
    %v536 = vpack.c.b16 %v410, %v408
    %v537 = vpack.c.b16 %v413, %v411
    %v538 = vpack.c.b16 %v414, %v412
    %v539 = vpack.c.b16 %v417, %v415
    %v540 = vpack.c.b16 %v418, %v416
    %v541 = vpack.c.b16 %v421, %v419
    %v542 = vpack.c.b16 %v422, %v420
    %v543 = vpack.c.b16 %v425, %v423
    %v544 = vpack.c.b16 %v426, %v424
    %v545 = vpack.c.b16 %v429, %v427
    %v546 = vpack.c.b16 %v430, %v428
    %v547 = vpack.c.b16 %v433, %v431
    %v548 = vpack.c.b16 %v434, %v432
    %v549 = vpack.c.b16 %v437, %v435
    %v550 = vpack.c.b16 %v438, %v436
    %v551 = vpack.c.b16 %v441, %v439
    %v552 = vpack.c.b16 %v442, %v440
    %v553 = vpack.c.b16 %v445, %v443
    %v554 = vpack.c.b16 %v446, %v444
    %v555 = vpack.c.b16 %v449, %v447
    %v556 = vpack.c.b16 %v450, %v448
    %v557 = vpack.c.b16 %v453, %v451
    %v558 = vpack.c.b16 %v454, %v452
    %v559 = vpack.c.b16 %v457, %v455
    %v560 = vpack.c.b16 %v458, %v456
    %v561 = vpack.c.b16 %v461, %v459
    %v562 = vpack.c.b16 %v462, %v460
    %v563 = vpack.c.b16 %v465, %v463
    %v564 = vpack.c.b16 %v466, %v464
    %vm663 = vcmask 130048
    %v665 = vsel %vm663, %v62, 0
    %667 = vmatprep.subr.bf16.mxu0 %v482
    %668 = vmatpush1.bf16.msra.mxu0 %v481
    %669 = vmatprep.subr.bf16.mxu0 %v480
    %670 = vmatpush1.bf16.msra.mxu0 %v479
    %671 = vmatprep.subr.bf16.mxu0 %v478
    %672 = vmatpush1.bf16.msra.mxu0 %v477
    %673 = vmatprep.subr.bf16.mxu0 %v476
    %674 = vmatpush1.bf16.msra.mxu0 %v475
    %675 = vmatprep.subr.bf16.mxu0 %v474
    %676 = vmatpush1.bf16.msra.mxu0 %v473
    %677 = vmatprep.subr.bf16.mxu0 %v472
    %678 = vmatpush1.bf16.msra.mxu0 %v471
    %679 = vmatprep.subr.bf16.mxu0 %v470
    %680 = vmatpush1.bf16.msra.mxu0 %v469
    %681 = vmatprep.subr.bf16.mxu0 %v468
    %682 = vmatpush1.bf16.msra.mxu0 %v467
    %683 = vmatprep.subr.bf16.mxu0 %v498
    %684 = vmatpush2.bf16.msra.mxu0 %v497
    %685 = vmatprep.subr.bf16.mxu0 %v496
    %686 = vmatpush2.bf16.msra.mxu0 %v495
    %687 = vmatprep.subr.bf16.mxu0 %v494
    %688 = vmatpush2.bf16.msra.mxu0 %v493
    %689 = vmatprep.subr.bf16.mxu0 %v492
    %690 = vmatpush2.bf16.msra.mxu0 %v491
    %691 = vmatprep.subr.bf16.mxu0 %v490
    %692 = vmatpush2.bf16.msra.mxu0 %v489
    %693 = vmatprep.subr.bf16.mxu0 %v488
    %694 = vmatpush2.bf16.msra.mxu0 %v487
    %695 = vmatprep.subr.bf16.mxu0 %v486
    %696 = vmatpush2.bf16.msra.mxu0 %v485
    %697 = vmatprep.subr.bf16.mxu0 %v484
    %698 = vmatpush2.bf16.msra.mxu0 %v483
    %699 = vmatprep.mubr.bf16.mxu0 %v57
    %700 = vmatmul.mubr.bf16.gmra.mxu0 %v56
    %v701 = vpop.f32.mrf.mxu0
    %v702 = vadd.f32 %v166, %v701
    %v703 = vpop.f32.mrf.mxu0
    %v704 = vadd.f32 %v170, %v703
    %v705 = vpop.f32.mrf.mxu0
    %v706 = vpop.f32.mrf.mxu0
    %707 = vdwg.mxu0
    %708 = vmatprep.subr.bf16.mxu0 %v514
    %709 = vmatpush1.bf16.msra.mxu0 %v513
    %710 = vmatprep.subr.bf16.mxu0 %v512
    %711 = vmatpush1.bf16.msra.mxu0 %v511
    %712 = vmatprep.subr.bf16.mxu0 %v510
    %713 = vmatpush1.bf16.msra.mxu0 %v509
    %714 = vmatprep.subr.bf16.mxu0 %v508
    %715 = vmatpush1.bf16.msra.mxu0 %v507
    %716 = vmatprep.subr.bf16.mxu0 %v506
    %717 = vmatpush1.bf16.msra.mxu0 %v505
    %718 = vmatprep.subr.bf16.mxu0 %v504
    %719 = vmatpush1.bf16.msra.mxu0 %v503
    %720 = vmatprep.subr.bf16.mxu0 %v502
    %721 = vmatpush1.bf16.msra.mxu0 %v501
    %722 = vmatprep.subr.bf16.mxu0 %v500
    %723 = vmatpush1.bf16.msra.mxu0 %v499
    %724 = vmatprep.subr.bf16.mxu0 %v530
    %725 = vmatpush2.bf16.msra.mxu0 %v529
    %726 = vmatprep.subr.bf16.mxu0 %v528
    %727 = vmatpush2.bf16.msra.mxu0 %v527
    %728 = vmatprep.subr.bf16.mxu0 %v526
    %729 = vmatpush2.bf16.msra.mxu0 %v525
    %730 = vmatprep.subr.bf16.mxu0 %v524
    %731 = vmatpush2.bf16.msra.mxu0 %v523
    %732 = vmatprep.subr.bf16.mxu0 %v522
    %733 = vmatpush2.bf16.msra.mxu0 %v521
    %734 = vmatprep.subr.bf16.mxu0 %v520
    %735 = vmatpush2.bf16.msra.mxu0 %v519
    %736 = vmatprep.subr.bf16.mxu0 %v518
    %737 = vmatpush2.bf16.msra.mxu0 %v517
    %738 = vmatprep.subr.bf16.mxu0 %v516
    %739 = vmatpush2.bf16.msra.mxu0 %v515
    %740 = vmatprep.mubr.bf16.mxu0 %v59
    %741 = vmatmul.mubr.bf16.gmra.mxu0 %v58
    %v742 = vpop.f32.mrf.mxu0
    %v743 = vadd.f32 %v702, %v742
    %v744 = vpop.f32.mrf.mxu0
    %v745 = vadd.f32 %v704, %v744
    %v746 = vpop.f32.mrf.mxu0
    %v747 = vpop.f32.mrf.mxu0
    %748 = vdwg.mxu0
    %749 = vmatprep.subr.bf16.mxu0 %v546
    %750 = vmatpush1.bf16.msra.mxu0 %v545
    %751 = vmatprep.subr.bf16.mxu0 %v544
    %752 = vmatpush1.bf16.msra.mxu0 %v543
    %753 = vmatprep.subr.bf16.mxu0 %v542
    %754 = vmatpush1.bf16.msra.mxu0 %v541
    %755 = vmatprep.subr.bf16.mxu0 %v540
    %756 = vmatpush1.bf16.msra.mxu0 %v539
    %757 = vmatprep.subr.bf16.mxu0 %v538
    %758 = vmatpush1.bf16.msra.mxu0 %v537
    %759 = vmatprep.subr.bf16.mxu0 %v536
    %760 = vmatpush1.bf16.msra.mxu0 %v535
    %761 = vmatprep.subr.bf16.mxu0 %v534
    %762 = vmatpush1.bf16.msra.mxu0 %v533
    %763 = vmatprep.subr.bf16.mxu0 %v532
    %764 = vmatpush1.bf16.msra.mxu0 %v531
    %765 = vmatprep.subr.bf16.mxu0 %v562
    %766 = vmatpush2.bf16.msra.mxu0 %v561
    %767 = vmatprep.subr.bf16.mxu0 %v560
    %768 = vmatpush2.bf16.msra.mxu0 %v559
    %769 = vmatprep.subr.bf16.mxu0 %v558
    %770 = vmatpush2.bf16.msra.mxu0 %v557
    %771 = vmatprep.subr.bf16.mxu0 %v556
    %772 = vmatpush2.bf16.msra.mxu0 %v555
    %773 = vmatprep.subr.bf16.mxu0 %v554
    %774 = vmatpush2.bf16.msra.mxu0 %v553
    %775 = vmatprep.subr.bf16.mxu0 %v552
    %776 = vmatpush2.bf16.msra.mxu0 %v551
    %777 = vmatprep.subr.bf16.mxu0 %v550
    %778 = vmatpush2.bf16.msra.mxu0 %v549
    %779 = vmatprep.subr.bf16.mxu0 %v548
    %780 = vmatpush2.bf16.msra.mxu0 %v547
    %781 = vmatprep.mubr.bf16.mxu0 %v61
    %782 = vmatmul.mubr.bf16.gmra.mxu0 %v60
    %v783 = vpop.f32.mrf.mxu0
    %v784 = vadd.f32 %v743, %v783
    %v785 = vpop.f32.mrf.mxu0
    %v786 = vadd.f32 %v745, %v785
    %v787 = vpop.f32.mrf.mxu0
    %v788 = vpop.f32.mrf.mxu0
    %789 = vdwg.mxu0
    %790 = vmatprep.subr.bf16.mxu0 0
    %791 = vmatpush1.bf16.msra.mxu0 0
    %792 = vmatprep.subr.bf16.mxu0 0
    %793 = vmatpush1.bf16.msra.mxu0 0
    %794 = vmatprep.subr.bf16.mxu0 0
    %795 = vmatpush1.bf16.msra.mxu0 0
    %796 = vmatprep.subr.bf16.mxu0 0
    %797 = vmatpush1.bf16.msra.mxu0 0
    %798 = vmatprep.subr.bf16.mxu0 0
    %799 = vmatpush1.bf16.msra.mxu0 0
    %800 = vmatprep.subr.bf16.mxu0 0
    %801 = vmatpush1.bf16.msra.mxu0 0
    %802 = vmatprep.subr.bf16.mxu0 0
    %803 = vmatpush1.bf16.msra.mxu0 0
    %804 = vmatprep.subr.bf16.mxu0 %v564
    %805 = vmatpush1.bf16.msra.mxu0 %v563
    %806 = vmatprep.subr.bf16.mxu0 0
    %807 = vmatpush2.bf16.msra.mxu0 0
    %808 = vmatprep.subr.bf16.mxu0 0
    %809 = vmatpush2.bf16.msra.mxu0 0
    %810 = vmatprep.subr.bf16.mxu0 0
    %811 = vmatpush2.bf16.msra.mxu0 0
    %812 = vmatprep.subr.bf16.mxu0 0
    %813 = vmatpush2.bf16.msra.mxu0 0
    %814 = vmatprep.subr.bf16.mxu0 0
    %815 = vmatpush2.bf16.msra.mxu0 0
    %816 = vmatprep.subr.bf16.mxu0 0
    %817 = vmatpush2.bf16.msra.mxu0 0
    %818 = vmatprep.subr.bf16.mxu0 0
    %819 = vmatpush2.bf16.msra.mxu0 0
    %820 = vmatprep.subr.bf16.mxu0 0
    %821 = vmatpush2.bf16.msra.mxu0 0
    %822 = vmatprep.mubr.bf16.mxu0 0
    %823 = vmatmul.mubr.bf16.gmra.mxu0 %v665
    %v824 = vpop.f32.mrf.mxu0
    %v825 = vadd.f32 %v784, %v824
    %v826 = vpop.f32.mrf.mxu0
    %v827 = vadd.f32 %v786, %v826
    %v828 = vpop.f32.mrf.mxu0
    %v829 = vpop.f32.mrf.mxu0
    %830 = vdwg.mxu0
    %v831 = vmax.f32 %v825, 0.0
    %v832 = vmax.f32 %v827, 0.0
    %v833 = vpack.c.bf16 %v831, %v831
    %v834 = vpack.c.bf16 %v832, %v832
    %v835 = vld [vmem:[%s3] sm:$0xf]
    %v836 = vld [vmem:[%s3 + $0x4] sm:$0xf]
    %v837 = vld [vmem:[%s3 + $0x8] sm:$0xf]
    %v838 = vld [vmem:[%s3 + $0xc] sm:$0xf]
    %v839 = vld [vmem:[%s3 + $0x10] sm:$0xf]
    %v840 = vld [vmem:[%s3 + $0x14] sm:$0xf]
    %v841 = vld [vmem:[%s3 + $0x18] sm:$0xf]
    %v842 = vld [vmem:[%s3 + $0x1c] sm:$0xf]
    %v843 = vld [vmem:[%s3 + $0x20] sm:$0xf]
    %v844 = vld [vmem:[%s3 + $0x24] sm:$0xf]
    %v845 = vld [vmem:[%s3 + $0x28] sm:$0xf]
    %v846 = vld [vmem:[%s3 + $0x2c] sm:$0xf]
    %v847 = vld [vmem:[%s3 + $0x30] sm:$0xf]
    %v848 = vld [vmem:[%s3 + $0x34] sm:$0xf]
    %v849 = vld [vmem:[%s3 + $0x38] sm:$0xf]
    %v850 = vld [vmem:[%s3 + $0x3c] sm:$0xf]
    %v851 = vld [vmem:[%s3 + $0x40] sm:$0xf]
    %v852 = vld [vmem:[%s3 + $0x44] sm:$0xf]
    %v853 = vld [vmem:[%s3 + $0x48] sm:$0xf]
    %v854 = vld [vmem:[%s3 + $0x4c] sm:$0xf]
    %v855 = vld [vmem:[%s3 + $0x50] sm:$0xf]
    %v856 = vld [vmem:[%s3 + $0x54] sm:$0xf]
    %v857 = vld [vmem:[%s3 + $0x58] sm:$0xf]
    %v858 = vld [vmem:[%s3 + $0x5c] sm:$0xf]
    %v859 = vld [vmem:[%s3 + $0x60] sm:$0xf]
    %v860 = vld [vmem:[%s3 + $0x64] sm:$0xf]
    %v861 = vld [vmem:[%s3 + $0x68] sm:$0xf]
    %v862 = vld [vmem:[%s3 + $0x6c] sm:$0xf]
    %v863 = vld [vmem:[%s3 + $0x70] sm:$0xf]
    %v864 = vld [vmem:[%s3 + $0x74] sm:$0xf]
    %v865 = vld [vmem:[%s3 + $0x78] sm:$0xf]
    %v866 = vld [vmem:[%s3 + $0x7c] sm:$0xf]
    %v867 = vld [vmem:[%s4] sm:$0x1]
    %v869 = vlaneseq
    %v870 = vshrl.u32 %v869, 7
    %v871 = vsub.s32 0, %v870
    %v872 = vrot.slane %v867, %v871
    %v906 = vunpack.c.l.b16 %v835
    %v907 = vunpack.c.l.b16 %v836
    %v908 = vunpack.c.l.b16 %v837
    %v909 = vunpack.c.l.b16 %v838
    %v910 = vunpack.c.l.b16 %v839
    %v911 = vunpack.c.l.b16 %v840
    %v912 = vunpack.c.l.b16 %v841
    %v913 = vunpack.c.l.b16 %v842
    %v914 = vunpack.c.l.b16 %v843
    %v915 = vunpack.c.l.b16 %v844
    %v916 = vunpack.c.l.b16 %v845
    %v917 = vunpack.c.l.b16 %v846
    %v918 = vunpack.c.l.b16 %v847
    %v919 = vunpack.c.l.b16 %v848
    %v920 = vunpack.c.l.b16 %v849
    %v921 = vunpack.c.l.b16 %v850
    %v922 = vunpack.c.l.b16 %v851
    %v923 = vunpack.c.l.b16 %v852
    %v924 = vunpack.c.l.b16 %v853
    %v925 = vunpack.c.l.b16 %v854
    %v926 = vunpack.c.l.b16 %v855
    %v927 = vunpack.c.l.b16 %v856
    %v928 = vunpack.c.l.b16 %v857
    %v929 = vunpack.c.l.b16 %v858
    %v930 = vunpack.c.l.b16 %v859
    %v931 = vunpack.c.l.b16 %v860
    %v932 = vunpack.c.l.b16 %v861
    %v933 = vunpack.c.l.b16 %v862
    %v934 = vunpack.c.l.b16 %v863
    %v935 = vunpack.c.l.b16 %v864
    %v936 = vunpack.c.l.b16 %v865
    %v937 = vunpack.c.l.b16 %v866
    %v938 = vpack.c.b16 %v907, %v906
    %v939 = vpack.c.b16 %v909, %v908
    %v940 = vpack.c.b16 %v911, %v910
    %v941 = vpack.c.b16 %v913, %v912
    %v942 = vpack.c.b16 %v915, %v914
    %v943 = vpack.c.b16 %v917, %v916
    %v944 = vpack.c.b16 %v919, %v918
    %v945 = vpack.c.b16 %v921, %v920
    %v946 = vpack.c.b16 %v923, %v922
    %v947 = vpack.c.b16 %v925, %v924
    %v948 = vpack.c.b16 %v927, %v926
    %v949 = vpack.c.b16 %v929, %v928
    %v950 = vpack.c.b16 %v931, %v930
    %v951 = vpack.c.b16 %v933, %v932
    %v952 = vpack.c.b16 %v935, %v934
    %v953 = vpack.c.b16 %v937, %v936
    %970 = vmatprep.subr.bf16.mxu0 0
    %971 = vmatpush1.bf16.msra.mxu0 %v945
    %972 = vmatprep.subr.bf16.mxu0 0
    %973 = vmatpush1.bf16.msra.mxu0 %v944
    %974 = vmatprep.subr.bf16.mxu0 0
    %975 = vmatpush1.bf16.msra.mxu0 %v943
    %976 = vmatprep.subr.bf16.mxu0 0
    %977 = vmatpush1.bf16.msra.mxu0 %v942
    %978 = vmatprep.subr.bf16.mxu0 0
    %979 = vmatpush1.bf16.msra.mxu0 %v941
    %980 = vmatprep.subr.bf16.mxu0 0
    %981 = vmatpush1.bf16.msra.mxu0 %v940
    %982 = vmatprep.subr.bf16.mxu0 0
    %983 = vmatpush1.bf16.msra.mxu0 %v939
    %984 = vmatprep.subr.bf16.mxu0 0
    %985 = vmatpush1.bf16.msra.mxu0 %v938
    %986 = vmatprep.subr.bf16.mxu0 0
    %987 = vmatpush2.bf16.msra.mxu0 %v953
    %988 = vmatprep.subr.bf16.mxu0 0
    %989 = vmatpush2.bf16.msra.mxu0 %v952
    %990 = vmatprep.subr.bf16.mxu0 0
    %991 = vmatpush2.bf16.msra.mxu0 %v951
    %992 = vmatprep.subr.bf16.mxu0 0
    %993 = vmatpush2.bf16.msra.mxu0 %v950
    %994 = vmatprep.subr.bf16.mxu0 0
    %995 = vmatpush2.bf16.msra.mxu0 %v949
    %996 = vmatprep.subr.bf16.mxu0 0
    %997 = vmatpush2.bf16.msra.mxu0 %v948
    %998 = vmatprep.subr.bf16.mxu0 0
    %999 = vmatpush2.bf16.msra.mxu0 %v947
    %1000 = vmatprep.subr.bf16.mxu0 0
    %1001 = vmatpush2.bf16.msra.mxu0 %v946
    %1002 = vmatprep.mubr.bf16.mxu0 %v834
    %1003 = vmatmul.mubr.bf16.gmra.mxu0 %v833
    %v1004 = vpop.f32.mrf.mxu0
    %v1005 = vadd.f32 %v872, %v1004
    %v1006 = vpop.f32.mrf.mxu0
    %v1007 = vpop.f32.mrf.mxu0
    %v1008 = vpop.f32.mrf.mxu0
    %1009 = vdwg.mxu0
    %v1010 = vmax.f32 %v1005, 0.0
    %v1011 = vpack.c.bf16 %v1010, %v1010
    %v1012 = vld [vmem:[%s5] sm:$0xf]
    %v1013 = vld [vmem:[%s5 + $0x4] sm:$0xf]
    %v1014 = vld [vmem:[%s5 + $0x8] sm:$0xf]
    %v1015 = vld [vmem:[%s5 + $0xc] sm:$0xf]
    %v1016 = vld [vmem:[%s5 + $0x10] sm:$0xf]
    %v1017 = vld [vmem:[%s5 + $0x14] sm:$0xf]
    %v1018 = vld [vmem:[%s5 + $0x18] sm:$0xf]
    %v1019 = vld [vmem:[%s5 + $0x1c] sm:$0xf]
    %v1020 = vld [vmem:[%s5 + $0x20] sm:$0xf]
    %v1021 = vld [vmem:[%s5 + $0x24] sm:$0xf]
    %v1022 = vld [vmem:[%s5 + $0x28] sm:$0xf]
    %v1023 = vld [vmem:[%s5 + $0x2c] sm:$0xf]
    %v1024 = vld [vmem:[%s5 + $0x30] sm:$0xf]
    %v1025 = vld [vmem:[%s5 + $0x34] sm:$0xf]
    %v1026 = vld [vmem:[%s5 + $0x38] sm:$0xf]
    %v1027 = vld [vmem:[%s5 + $0x3c] sm:$0xf]
    %v1028 = vld [vmem:[%s6] sm:$0x1]
    %v1030 = vlaneseq
    %v1031 = vshrl.u32 %v1030, 7
    %v1032 = vsub.s32 0, %v1031
    %v1033 = vrot.slane %v1028, %v1032
    %v1051 = vunpack.c.l.b16 %v1012
    %v1052 = vunpack.c.l.b16 %v1013
    %v1053 = vunpack.c.l.b16 %v1014
    %v1054 = vunpack.c.l.b16 %v1015
    %v1055 = vunpack.c.l.b16 %v1016
    %v1056 = vunpack.c.l.b16 %v1017
    %v1057 = vunpack.c.l.b16 %v1018
    %v1058 = vunpack.c.l.b16 %v1019
    %v1059 = vunpack.c.l.b16 %v1020
    %v1060 = vunpack.c.l.b16 %v1021
    %v1061 = vunpack.c.l.b16 %v1022
    %v1062 = vunpack.c.l.b16 %v1023
    %v1063 = vunpack.c.l.b16 %v1024
    %v1064 = vunpack.c.l.b16 %v1025
    %v1065 = vunpack.c.l.b16 %v1026
    %v1066 = vunpack.c.l.b16 %v1027
    %v1067 = vpack.c.b16 %v1052, %v1051
    %v1068 = vpack.c.b16 %v1054, %v1053
    %v1069 = vpack.c.b16 %v1056, %v1055
    %v1070 = vpack.c.b16 %v1058, %v1057
    %v1071 = vpack.c.b16 %v1060, %v1059
    %v1072 = vpack.c.b16 %v1062, %v1061
    %v1073 = vpack.c.b16 %v1064, %v1063
    %v1074 = vpack.c.b16 %v1066, %v1065
    %1083 = vmatprep.subr.bf16.mxu0 0
    %1084 = vmatpush1.bf16.msra.mxu0 %v1074
    %1085 = vmatprep.subr.bf16.mxu0 0
    %1086 = vmatpush1.bf16.msra.mxu0 %v1073
    %1087 = vmatprep.subr.bf16.mxu0 0
    %1088 = vmatpush1.bf16.msra.mxu0 %v1072
    %1089 = vmatprep.subr.bf16.mxu0 0
    %1090 = vmatpush1.bf16.msra.mxu0 %v1071
    %1091 = vmatprep.subr.bf16.mxu0 0
    %1092 = vmatpush1.bf16.msra.mxu0 %v1070
    %1093 = vmatprep.subr.bf16.mxu0 0
    %1094 = vmatpush1.bf16.msra.mxu0 %v1069
    %1095 = vmatprep.subr.bf16.mxu0 0
    %1096 = vmatpush1.bf16.msra.mxu0 %v1068
    %1097 = vmatprep.subr.bf16.mxu0 0
    %1098 = vmatpush1.bf16.msra.mxu0 %v1067
    %1099 = vmatprep.subr.bf16.mxu0 0
    %1100 = vmatpush2.bf16.msra.mxu0 0
    %1101 = vmatprep.subr.bf16.mxu0 0
    %1102 = vmatpush2.bf16.msra.mxu0 0
    %1103 = vmatprep.subr.bf16.mxu0 0
    %1104 = vmatpush2.bf16.msra.mxu0 0
    %1105 = vmatprep.subr.bf16.mxu0 0
    %1106 = vmatpush2.bf16.msra.mxu0 0
    %1107 = vmatprep.subr.bf16.mxu0 0
    %1108 = vmatpush2.bf16.msra.mxu0 0
    %1109 = vmatprep.subr.bf16.mxu0 0
    %1110 = vmatpush2.bf16.msra.mxu0 0
    %1111 = vmatprep.subr.bf16.mxu0 0
    %1112 = vmatpush2.bf16.msra.mxu0 0
    %1113 = vmatprep.subr.bf16.mxu0 0
    %1114 = vmatpush2.bf16.msra.mxu0 0
    %1115 = vmatprep.mubr.bf16.mxu0 0
    %1116 = vmatmul.mubr.bf16.gmra.mxu0 %v1011
    %v1117 = vpop.f32.mrf.mxu0
    %v1118 = vadd.f32 %v1033, %v1117
    %v1119 = vpop.f32.mrf.mxu0
    %v1120 = vpop.f32.mrf.mxu0
    %v1121 = vpop.f32.mrf.mxu0
    %1122 = vdwg.mxu0
    %vm1123 = vcmask 162816
    %1124 = vst.msk [vmem:[#allocation4] sm:$0xff] %vm1123, %v1118
    %v1125 = vpack.c.bf16 %v1118, %v1118
    %v1126 = vld [vmem:[%s7] sm:$0xf]
    %v1127 = vld [vmem:[%s7 + $0x4] sm:$0xf]
    %v1128 = vld [vmem:[%s7 + $0x8] sm:$0xf]
    %v1129 = vld [vmem:[%s7 + $0xc] sm:$0xf]
    %v1130 = vld [vmem:[%s7 + $0x10] sm:$0xf]
    %v1131 = vld [vmem:[%s7 + $0x14] sm:$0xf]
    %v1132 = vld [vmem:[%s7 + $0x18] sm:$0xf]
    %v1133 = vld [vmem:[%s7 + $0x1c] sm:$0xf]
    %v1134 = vld [vmem:[%s7 + $0x20] sm:$0xf]
    %v1135 = vld [vmem:[%s7 + $0x24] sm:$0xf]
    %v1136 = vld [vmem:[%s7 + $0x28] sm:$0xf]
    %v1137 = vld [vmem:[%s7 + $0x2c] sm:$0xf]
    %v1138 = vld [vmem:[%s7 + $0x30] sm:$0xf]
    %v1139 = vld [vmem:[%s7 + $0x34] sm:$0xf]
    %v1140 = vld [vmem:[%s7 + $0x38] sm:$0xf]
    %v1141 = vld [vmem:[%s7 + $0x3c] sm:$0xf]
    %v1142 = vld [vmem:[%s8] sm:$0x1]
    %v1144 = vlaneseq
    %v1145 = vshrl.u32 %v1144, 7
    %v1146 = vsub.s32 0, %v1145
    %v1147 = vrot.slane %v1142, %v1146
    %v1165 = vunpack.c.l.b16 %v1126
    %v1166 = vunpack.c.l.b16 %v1127
    %v1167 = vunpack.c.l.b16 %v1128
    %v1168 = vunpack.c.l.b16 %v1129
    %v1169 = vunpack.c.l.b16 %v1130
    %v1170 = vunpack.c.l.b16 %v1131
    %v1171 = vunpack.c.l.b16 %v1132
    %v1172 = vunpack.c.l.b16 %v1133
    %v1173 = vunpack.c.l.b16 %v1134
    %v1174 = vunpack.c.l.b16 %v1135
    %v1175 = vunpack.c.l.b16 %v1136
    %v1176 = vunpack.c.l.b16 %v1137
    %v1177 = vunpack.c.l.b16 %v1138
    %v1178 = vunpack.c.l.b16 %v1139
    %v1179 = vunpack.c.l.b16 %v1140
    %v1180 = vunpack.c.l.b16 %v1141
    %v1181 = vpack.c.b16 %v1166, %v1165
    %v1182 = vpack.c.b16 %v1168, %v1167
    %v1183 = vpack.c.b16 %v1170, %v1169
    %v1184 = vpack.c.b16 %v1172, %v1171
    %v1185 = vpack.c.b16 %v1174, %v1173
    %v1186 = vpack.c.b16 %v1176, %v1175
    %v1187 = vpack.c.b16 %v1178, %v1177
    %v1188 = vpack.c.b16 %v1180, %v1179
    %1197 = vmatprep.subr.bf16.mxu0 0
    %1198 = vmatpush1.bf16.msra.mxu0 %v1188
    %1199 = vmatprep.subr.bf16.mxu0 0
    %1200 = vmatpush1.bf16.msra.mxu0 %v1187
    %1201 = vmatprep.subr.bf16.mxu0 0
    %1202 = vmatpush1.bf16.msra.mxu0 %v1186
    %1203 = vmatprep.subr.bf16.mxu0 0
    %1204 = vmatpush1.bf16.msra.mxu0 %v1185
    %1205 = vmatprep.subr.bf16.mxu0 0
    %1206 = vmatpush1.bf16.msra.mxu0 %v1184
    %1207 = vmatprep.subr.bf16.mxu0 0
    %1208 = vmatpush1.bf16.msra.mxu0 %v1183
    %1209 = vmatprep.subr.bf16.mxu0 0
    %1210 = vmatpush1.bf16.msra.mxu0 %v1182
    %1211 = vmatprep.subr.bf16.mxu0 0
    %1212 = vmatpush1.bf16.msra.mxu0 %v1181
    %1213 = vmatprep.subr.bf16.mxu0 0
    %1214 = vmatpush2.bf16.msra.mxu0 0
    %1215 = vmatprep.subr.bf16.mxu0 0
    %1216 = vmatpush2.bf16.msra.mxu0 0
    %1217 = vmatprep.subr.bf16.mxu0 0
    %1218 = vmatpush2.bf16.msra.mxu0 0
    %1219 = vmatprep.subr.bf16.mxu0 0
    %1220 = vmatpush2.bf16.msra.mxu0 0
    %1221 = vmatprep.subr.bf16.mxu0 0
    %1222 = vmatpush2.bf16.msra.mxu0 0
    %1223 = vmatprep.subr.bf16.mxu0 0
    %1224 = vmatpush2.bf16.msra.mxu0 0
    %1225 = vmatprep.subr.bf16.mxu0 0
    %1226 = vmatpush2.bf16.msra.mxu0 0
    %1227 = vmatprep.subr.bf16.mxu0 0
    %1228 = vmatpush2.bf16.msra.mxu0 0
    %1229 = vmatprep.mubr.bf16.mxu0 0
    %1230 = vmatmul.mubr.bf16.gmra.mxu0 %v1125
    %v1231 = vpop.f32.mrf.mxu0
    %v1232 = vadd.f32 %v1147, %v1231
    %v1233 = vpop.f32.mrf.mxu0
    %v1234 = vpop.f32.mrf.mxu0
    %v1235 = vpop.f32.mrf.mxu0
    %1236 = vdwg.mxu0
    %v1237 = vmax.f32 %v1232, 0.0
    %v1238 = vpack.c.bf16 %v1237, %v1237
    %v1239 = vld [vmem:[%s9] sm:$0xff]
    %v1240 = vld [vmem:[%s9 + $0x8] sm:$0xff]
    %v1241 = vld [vmem:[%s9 + $0x10] sm:$0xff]
    %v1242 = vld [vmem:[%s9 + $0x18] sm:$0xff]
    %v1243 = vld [vmem:[%s9 + $0x20] sm:$0xff]
    %v1244 = vld [vmem:[%s9 + $0x28] sm:$0xff]
    %v1245 = vld [vmem:[%s9 + $0x30] sm:$0xff]
    %v1246 = vld [vmem:[%s9 + $0x38] sm:$0xff]
    %v1247 = vld [vmem:[%s9 + $0x40] sm:$0xff]
    %v1248 = vld [vmem:[%s9 + $0x48] sm:$0xff]
    %v1249 = vld [vmem:[%s9 + $0x50] sm:$0xff]
    %v1250 = vld [vmem:[%s9 + $0x58] sm:$0xff]
    %v1251 = vld [vmem:[%s9 + $0x60] sm:$0xff]
    %v1252 = vld [vmem:[%s9 + $0x68] sm:$0xff]
    %v1253 = vld [vmem:[%s9 + $0x70] sm:$0xff]
    %v1254 = vld [vmem:[%s9 + $0x78] sm:$0xff]
    %v1255 = vld [vmem:[%s10] sm:$0x3]
    %v1257 = vlaneseq
    %v1258 = vshrl.u32 %v1257, 7
    %v1259 = vsub.s32 0, %v1258
    %v1260 = vrot.slane %v1255, %v1259
    %v1261 = vlaneseq
    %v1262 = vshrl.u32 %v1261, 7
    %v1263 = vsub.s32 1, %v1262
    %v1264 = vrot.slane %v1255, %v1263
    %v1283 = vunpack.c.l.b16 %v1239
    %v1284 = vunpack.c.h.b16 %v1239
    %v1285 = vunpack.c.l.b16 %v1240
    %v1286 = vunpack.c.h.b16 %v1240
    %v1287 = vunpack.c.l.b16 %v1241
    %v1288 = vunpack.c.h.b16 %v1241
    %v1289 = vunpack.c.l.b16 %v1242
    %v1290 = vunpack.c.h.b16 %v1242
    %v1291 = vunpack.c.l.b16 %v1243
    %v1292 = vunpack.c.h.b16 %v1243
    %v1293 = vunpack.c.l.b16 %v1244
    %v1294 = vunpack.c.h.b16 %v1244
    %v1295 = vunpack.c.l.b16 %v1245
    %v1296 = vunpack.c.h.b16 %v1245
    %v1297 = vunpack.c.l.b16 %v1246
    %v1298 = vunpack.c.h.b16 %v1246
    %v1299 = vunpack.c.l.b16 %v1247
    %v1300 = vunpack.c.h.b16 %v1247
    %v1301 = vunpack.c.l.b16 %v1248
    %v1302 = vunpack.c.h.b16 %v1248
    %v1303 = vunpack.c.l.b16 %v1249
    %v1304 = vunpack.c.h.b16 %v1249
    %v1305 = vunpack.c.l.b16 %v1250
    %v1306 = vunpack.c.h.b16 %v1250
    %v1307 = vunpack.c.l.b16 %v1251
    %v1308 = vunpack.c.h.b16 %v1251
    %v1309 = vunpack.c.l.b16 %v1252
    %v1310 = vunpack.c.h.b16 %v1252
    %v1311 = vunpack.c.l.b16 %v1253
    %v1312 = vunpack.c.h.b16 %v1253
    %v1313 = vunpack.c.l.b16 %v1254
    %v1314 = vunpack.c.h.b16 %v1254
    %v1315 = vpack.c.b16 %v1285, %v1283
    %v1316 = vpack.c.b16 %v1286, %v1284
    %v1317 = vpack.c.b16 %v1289, %v1287
    %v1318 = vpack.c.b16 %v1290, %v1288
    %v1319 = vpack.c.b16 %v1293, %v1291
    %v1320 = vpack.c.b16 %v1294, %v1292
    %v1321 = vpack.c.b16 %v1297, %v1295
    %v1322 = vpack.c.b16 %v1298, %v1296
    %v1323 = vpack.c.b16 %v1301, %v1299
    %v1324 = vpack.c.b16 %v1302, %v1300
    %v1325 = vpack.c.b16 %v1305, %v1303
    %v1326 = vpack.c.b16 %v1306, %v1304
    %v1327 = vpack.c.b16 %v1309, %v1307
    %v1328 = vpack.c.b16 %v1310, %v1308
    %v1329 = vpack.c.b16 %v1313, %v1311
    %v1330 = vpack.c.b16 %v1314, %v1312
    %1347 = vmatprep.subr.bf16.mxu0 %v1330
    %1348 = vmatpush1.bf16.msra.mxu0 %v1329
    %1349 = vmatprep.subr.bf16.mxu0 %v1328
    %1350 = vmatpush1.bf16.msra.mxu0 %v1327
    %1351 = vmatprep.subr.bf16.mxu0 %v1326
    %1352 = vmatpush1.bf16.msra.mxu0 %v1325
    %1353 = vmatprep.subr.bf16.mxu0 %v1324
    %1354 = vmatpush1.bf16.msra.mxu0 %v1323
    %1355 = vmatprep.subr.bf16.mxu0 %v1322
    %1356 = vmatpush1.bf16.msra.mxu0 %v1321
    %1357 = vmatprep.subr.bf16.mxu0 %v1320
    %1358 = vmatpush1.bf16.msra.mxu0 %v1319
    %1359 = vmatprep.subr.bf16.mxu0 %v1318
    %1360 = vmatpush1.bf16.msra.mxu0 %v1317
    %1361 = vmatprep.subr.bf16.mxu0 %v1316
    %1362 = vmatpush1.bf16.msra.mxu0 %v1315
    %1363 = vmatprep.subr.bf16.mxu0 0
    %1364 = vmatpush2.bf16.msra.mxu0 0
    %1365 = vmatprep.subr.bf16.mxu0 0
    %1366 = vmatpush2.bf16.msra.mxu0 0
    %1367 = vmatprep.subr.bf16.mxu0 0
    %1368 = vmatpush2.bf16.msra.mxu0 0
    %1369 = vmatprep.subr.bf16.mxu0 0
    %1370 = vmatpush2.bf16.msra.mxu0 0
    %1371 = vmatprep.subr.bf16.mxu0 0
    %1372 = vmatpush2.bf16.msra.mxu0 0
    %1373 = vmatprep.subr.bf16.mxu0 0
    %1374 = vmatpush2.bf16.msra.mxu0 0
    %1375 = vmatprep.subr.bf16.mxu0 0
    %1376 = vmatpush2.bf16.msra.mxu0 0
    %1377 = vmatprep.subr.bf16.mxu0 0
    %1378 = vmatpush2.bf16.msra.mxu0 0
    %1379 = vmatprep.mubr.bf16.mxu0 0
    %1380 = vmatmul.mubr.bf16.gmra.mxu0 %v1238
    %v1381 = vpop.f32.mrf.mxu0
    %v1382 = vadd.f32 %v1260, %v1381
    %v1383 = vpop.f32.mrf.mxu0
    %v1384 = vadd.f32 %v1264, %v1383
    %v1385 = vpop.f32.mrf.mxu0
    %v1386 = vpop.f32.mrf.mxu0
    %1387 = vdwg.mxu0
    %v1388 = vmax.f32 %v1382, 0.0
    %v1389 = vmax.f32 %v1384, 0.0
    %v1390 = vpack.c.bf16 %v1388, %v1388
    %v1391 = vpack.c.bf16 %v1389, %v1389
    %v1392 = vld [vmem:[%s11] sm:$0xff]
    %v1393 = vld [vmem:[%s11 + $0x8] sm:$0xff]
    %v1394 = vld [vmem:[%s11 + $0x10] sm:$0xff]
    %v1395 = vld [vmem:[%s11 + $0x18] sm:$0xf]
    %v1396 = vld [vmem:[%s11 + $0x1c] sm:$0xff]
    %v1397 = vld [vmem:[%s11 + $0x24] sm:$0xff]
    %v1398 = vld [vmem:[%s11 + $0x2c] sm:$0xff]
    %v1399 = vld [vmem:[%s11 + $0x34] sm:$0xf]
    %v1400 = vld [vmem:[%s11 + $0x38] sm:$0xff]
    %v1401 = vld [vmem:[%s11 + $0x40] sm:$0xff]
    %v1402 = vld [vmem:[%s11 + $0x48] sm:$0xff]
    %v1403 = vld [vmem:[%s11 + $0x50] sm:$0xf]
    %v1404 = vld [vmem:[%s11 + $0x54] sm:$0xff]
    %v1405 = vld [vmem:[%s11 + $0x5c] sm:$0xff]
    %v1406 = vld [vmem:[%s11 + $0x64] sm:$0xff]
    %v1407 = vld [vmem:[%s11 + $0x6c] sm:$0xf]
    %v1408 = vld [vmem:[%s11 + $0x70] sm:$0xff]
    %v1409 = vld [vmem:[%s11 + $0x78] sm:$0xff]
    %v1410 = vld [vmem:[%s11 + $0x80] sm:$0xff]
    %v1411 = vld [vmem:[%s11 + $0x88] sm:$0xf]
    %v1412 = vld [vmem:[%s11 + $0x8c] sm:$0xff]
    %v1413 = vld [vmem:[%s11 + $0x94] sm:$0xff]
    %v1414 = vld [vmem:[%s11 + $0x9c] sm:$0xff]
    %v1415 = vld [vmem:[%s11 + $0xa4] sm:$0xf]
    %v1416 = vld [vmem:[%s11 + $0xa8] sm:$0xff]
    %v1417 = vld [vmem:[%s11 + $0xb0] sm:$0xff]
    %v1418 = vld [vmem:[%s11 + $0xb8] sm:$0xff]
    %v1419 = vld [vmem:[%s11 + $0xc0] sm:$0xf]
    %v1420 = vld [vmem:[%s11 + $0xc4] sm:$0xff]
    %v1421 = vld [vmem:[%s11 + $0xcc] sm:$0xff]
    %v1422 = vld [vmem:[%s11 + $0xd4] sm:$0xff]
    %v1423 = vld [vmem:[%s11 + $0xdc] sm:$0xf]
    %v1424 = vld [vmem:[%s11 + $0xe0] sm:$0xff]
    %v1425 = vld [vmem:[%s11 + $0xe8] sm:$0xff]
    %v1426 = vld [vmem:[%s11 + $0xf0] sm:$0xff]
    %v1427 = vld [vmem:[%s11 + $0xf8] sm:$0xf]
    %v1428 = vld [vmem:[%s11 + $0xfc] sm:$0xff]
    %v1429 = vld [vmem:[%s11 + $0x104] sm:$0xff]
    %v1430 = vld [vmem:[%s11 + $0x10c] sm:$0xff]
    %v1431 = vld [vmem:[%s11 + $0x114] sm:$0xf]
    %v1432 = vld [vmem:[%s11 + $0x118] sm:$0xff]
    %v1433 = vld [vmem:[%s11 + $0x120] sm:$0xff]
    %v1434 = vld [vmem:[%s11 + $0x128] sm:$0xff]
    %v1435 = vld [vmem:[%s11 + $0x130] sm:$0xf]
    %v1436 = vld [vmem:[%s11 + $0x134] sm:$0xff]
    %v1437 = vld [vmem:[%s11 + $0x13c] sm:$0xff]
    %v1438 = vld [vmem:[%s11 + $0x144] sm:$0xff]
    %v1439 = vld [vmem:[%s11 + $0x14c] sm:$0xf]
    %v1440 = vld [vmem:[%s11 + $0x150] sm:$0xff]
    %v1441 = vld [vmem:[%s11 + $0x158] sm:$0xff]
    %v1442 = vld [vmem:[%s11 + $0x160] sm:$0xff]
    %v1443 = vld [vmem:[%s11 + $0x168] sm:$0xf]
    %v1444 = vld [vmem:[%s11 + $0x16c] sm:$0xff]
    %v1445 = vld [vmem:[%s11 + $0x174] sm:$0xff]
    %v1446 = vld [vmem:[%s11 + $0x17c] sm:$0xff]
    %v1447 = vld [vmem:[%s11 + $0x184] sm:$0xf]
    %v1448 = vld [vmem:[%s11 + $0x188] sm:$0xff]
    %v1449 = vld [vmem:[%s11 + $0x190] sm:$0xff]
    %v1450 = vld [vmem:[%s11 + $0x198] sm:$0xff]
    %v1451 = vld [vmem:[%s11 + $0x1a0] sm:$0xf]
    %v1452 = vld [vmem:[%s11 + $0x1a4] sm:$0xff]
    %v1453 = vld [vmem:[%s11 + $0x1ac] sm:$0xff]
    %v1454 = vld [vmem:[%s11 + $0x1b4] sm:$0xff]
    %v1455 = vld [vmem:[%s11 + $0x1bc] sm:$0xf]
    %v1456 = vld [vmem:[%s11 + $0x1c0] sm:$0xff]
    %v1457 = vld [vmem:[%s11 + $0x1c8] sm:$0xff]
    %v1458 = vld [vmem:[%s11 + $0x1d0] sm:$0xff]
    %v1459 = vld [vmem:[%s11 + $0x1d8] sm:$0xf]
    %v1460 = vld [vmem:[%s11 + $0x1dc] sm:$0xff]
    %v1461 = vld [vmem:[%s11 + $0x1e4] sm:$0xff]
    %v1462 = vld [vmem:[%s11 + $0x1ec] sm:$0xff]
    %v1463 = vld [vmem:[%s11 + $0x1f4] sm:$0xf]
    %v1464 = vld [vmem:[%s11 + $0x1f8] sm:$0xff]
    %v1465 = vld [vmem:[%s11 + $0x200] sm:$0xff]
    %v1466 = vld [vmem:[%s11 + $0x208] sm:$0xff]
    %v1467 = vld [vmem:[%s11 + $0x210] sm:$0xf]
    %v1468 = vld [vmem:[%s11 + $0x214] sm:$0xff]
    %v1469 = vld [vmem:[%s11 + $0x21c] sm:$0xff]
    %v1470 = vld [vmem:[%s11 + $0x224] sm:$0xff]
    %v1471 = vld [vmem:[%s11 + $0x22c] sm:$0xf]
    %v1472 = vld [vmem:[%s11 + $0x230] sm:$0xff]
    %v1473 = vld [vmem:[%s11 + $0x238] sm:$0xff]
    %v1474 = vld [vmem:[%s11 + $0x240] sm:$0xff]
    %v1475 = vld [vmem:[%s11 + $0x248] sm:$0xf]
    %v1476 = vld [vmem:[%s11 + $0x24c] sm:$0xff]
    %v1477 = vld [vmem:[%s11 + $0x254] sm:$0xff]
    %v1478 = vld [vmem:[%s11 + $0x25c] sm:$0xff]
    %v1479 = vld [vmem:[%s11 + $0x264] sm:$0xf]
    %v1480 = vld [vmem:[%s11 + $0x268] sm:$0xff]
    %v1481 = vld [vmem:[%s11 + $0x270] sm:$0xff]
    %v1482 = vld [vmem:[%s11 + $0x278] sm:$0xff]
    %v1483 = vld [vmem:[%s11 + $0x280] sm:$0xf]
    %v1484 = vld [vmem:[%s11 + $0x284] sm:$0xff]
    %v1485 = vld [vmem:[%s11 + $0x28c] sm:$0xff]
    %v1486 = vld [vmem:[%s11 + $0x294] sm:$0xff]
    %v1487 = vld [vmem:[%s11 + $0x29c] sm:$0xf]
    %v1488 = vld [vmem:[%s11 + $0x2a0] sm:$0xff]
    %v1489 = vld [vmem:[%s11 + $0x2a8] sm:$0xff]
    %v1490 = vld [vmem:[%s11 + $0x2b0] sm:$0xff]
    %v1491 = vld [vmem:[%s11 + $0x2b8] sm:$0xf]
    %v1492 = vld [vmem:[%s11 + $0x2bc] sm:$0xff]
    %v1493 = vld [vmem:[%s11 + $0x2c4] sm:$0xff]
    %v1494 = vld [vmem:[%s11 + $0x2cc] sm:$0xff]
    %v1495 = vld [vmem:[%s11 + $0x2d4] sm:$0xf]
    %v1496 = vld [vmem:[%s11 + $0x2d8] sm:$0xff]
    %v1497 = vld [vmem:[%s11 + $0x2e0] sm:$0xff]
    %v1498 = vld [vmem:[%s11 + $0x2e8] sm:$0xff]
    %v1499 = vld [vmem:[%s11 + $0x2f0] sm:$0xf]
    %v1500 = vld [vmem:[%s11 + $0x2f4] sm:$0xff]
    %v1501 = vld [vmem:[%s11 + $0x2fc] sm:$0xff]
    %v1502 = vld [vmem:[%s11 + $0x304] sm:$0xff]
    %v1503 = vld [vmem:[%s11 + $0x30c] sm:$0xf]
    %v1504 = vld [vmem:[%s11 + $0x310] sm:$0xff]
    %v1505 = vld [vmem:[%s11 + $0x318] sm:$0xff]
    %v1506 = vld [vmem:[%s11 + $0x320] sm:$0xff]
    %v1507 = vld [vmem:[%s11 + $0x328] sm:$0xf]
    %v1508 = vld [vmem:[%s11 + $0x32c] sm:$0xff]
    %v1509 = vld [vmem:[%s11 + $0x334] sm:$0xff]
    %v1510 = vld [vmem:[%s11 + $0x33c] sm:$0xff]
    %v1511 = vld [vmem:[%s11 + $0x344] sm:$0xf]
    %v1512 = vld [vmem:[%s11 + $0x348] sm:$0xff]
    %v1513 = vld [vmem:[%s11 + $0x350] sm:$0xff]
    %v1514 = vld [vmem:[%s11 + $0x358] sm:$0xff]
    %v1515 = vld [vmem:[%s11 + $0x360] sm:$0xf]
    %v1516 = vld [vmem:[%s11 + $0x364] sm:$0xff]
    %v1517 = vld [vmem:[%s11 + $0x36c] sm:$0xff]
    %v1518 = vld [vmem:[%s11 + $0x374] sm:$0xff]
    %v1519 = vld [vmem:[%s11 + $0x37c] sm:$0xf]
    %v1520 = vld [vmem:[%s12] sm:$0x7f]
    %v1522 = vlaneseq
    %v1523 = vshrl.u32 %v1522, 7
    %v1524 = vsub.s32 0, %v1523
    %v1525 = vrot.slane %v1520, %v1524
    %v1526 = vlaneseq
    %v1527 = vshrl.u32 %v1526, 7
    %v1528 = vsub.s32 1, %v1527
    %v1529 = vrot.slane %v1520, %v1528
    %v1530 = vlaneseq
    %v1531 = vshrl.u32 %v1530, 7
    %v1532 = vsub.s32 2, %v1531
    %v1533 = vrot.slane %v1520, %v1532
    %v1534 = vlaneseq
    %v1535 = vshrl.u32 %v1534, 7
    %v1536 = vsub.s32 3, %v1535
    %v1537 = vrot.slane %v1520, %v1536
    %v1538 = vlaneseq
    %v1539 = vshrl.u32 %v1538, 7
    %v1540 = vsub.s32 4, %v1539
    %v1541 = vrot.slane %v1520, %v1540
    %v1542 = vlaneseq
    %v1543 = vshrl.u32 %v1542, 7
    %v1544 = vsub.s32 5, %v1543
    %v1545 = vrot.slane %v1520, %v1544
    %v1546 = vlaneseq
    %v1547 = vshrl.u32 %v1546, 7
    %v1548 = vsub.s32 6, %v1547
    %v1549 = vrot.slane %v1520, %v1548
    %v1685 = vunpack.c.l.b16 %v1392
    %v1686 = vunpack.c.h.b16 %v1392
    %v1687 = vunpack.c.l.b16 %v1393
    %v1688 = vunpack.c.h.b16 %v1393
    %v1689 = vunpack.c.l.b16 %v1394
    %v1690 = vunpack.c.h.b16 %v1394
    %v1691 = vunpack.c.l.b16 %v1395
    %v1692 = vunpack.c.l.b16 %v1396
    %v1693 = vunpack.c.h.b16 %v1396
    %v1694 = vunpack.c.l.b16 %v1397
    %v1695 = vunpack.c.h.b16 %v1397
    %v1696 = vunpack.c.l.b16 %v1398
    %v1697 = vunpack.c.h.b16 %v1398
    %v1698 = vunpack.c.l.b16 %v1399
    %v1699 = vunpack.c.l.b16 %v1400
    %v1700 = vunpack.c.h.b16 %v1400
    %v1701 = vunpack.c.l.b16 %v1401
    %v1702 = vunpack.c.h.b16 %v1401
    %v1703 = vunpack.c.l.b16 %v1402
    %v1704 = vunpack.c.h.b16 %v1402
    %v1705 = vunpack.c.l.b16 %v1403
    %v1706 = vunpack.c.l.b16 %v1404
    %v1707 = vunpack.c.h.b16 %v1404
    %v1708 = vunpack.c.l.b16 %v1405
    %v1709 = vunpack.c.h.b16 %v1405
    %v1710 = vunpack.c.l.b16 %v1406
    %v1711 = vunpack.c.h.b16 %v1406
    %v1712 = vunpack.c.l.b16 %v1407
    %v1713 = vunpack.c.l.b16 %v1408
    %v1714 = vunpack.c.h.b16 %v1408
    %v1715 = vunpack.c.l.b16 %v1409
    %v1716 = vunpack.c.h.b16 %v1409
    %v1717 = vunpack.c.l.b16 %v1410
    %v1718 = vunpack.c.h.b16 %v1410
    %v1719 = vunpack.c.l.b16 %v1411
    %v1720 = vunpack.c.l.b16 %v1412
    %v1721 = vunpack.c.h.b16 %v1412
    %v1722 = vunpack.c.l.b16 %v1413
    %v1723 = vunpack.c.h.b16 %v1413
    %v1724 = vunpack.c.l.b16 %v1414
    %v1725 = vunpack.c.h.b16 %v1414
    %v1726 = vunpack.c.l.b16 %v1415
    %v1727 = vunpack.c.l.b16 %v1416
    %v1728 = vunpack.c.h.b16 %v1416
    %v1729 = vunpack.c.l.b16 %v1417
    %v1730 = vunpack.c.h.b16 %v1417
    %v1731 = vunpack.c.l.b16 %v1418
    %v1732 = vunpack.c.h.b16 %v1418
    %v1733 = vunpack.c.l.b16 %v1419
    %v1734 = vunpack.c.l.b16 %v1420
    %v1735 = vunpack.c.h.b16 %v1420
    %v1736 = vunpack.c.l.b16 %v1421
    %v1737 = vunpack.c.h.b16 %v1421
    %v1738 = vunpack.c.l.b16 %v1422
    %v1739 = vunpack.c.h.b16 %v1422
    %v1740 = vunpack.c.l.b16 %v1423
    %v1741 = vunpack.c.l.b16 %v1424
    %v1742 = vunpack.c.h.b16 %v1424
    %v1743 = vunpack.c.l.b16 %v1425
    %v1744 = vunpack.c.h.b16 %v1425
    %v1745 = vunpack.c.l.b16 %v1426
    %v1746 = vunpack.c.h.b16 %v1426
    %v1747 = vunpack.c.l.b16 %v1427
    %v1748 = vunpack.c.l.b16 %v1428
    %v1749 = vunpack.c.h.b16 %v1428
    %v1750 = vunpack.c.l.b16 %v1429
    %v1751 = vunpack.c.h.b16 %v1429
    %v1752 = vunpack.c.l.b16 %v1430
    %v1753 = vunpack.c.h.b16 %v1430
    %v1754 = vunpack.c.l.b16 %v1431
    %v1755 = vunpack.c.l.b16 %v1432
    %v1756 = vunpack.c.h.b16 %v1432
    %v1757 = vunpack.c.l.b16 %v1433
    %v1758 = vunpack.c.h.b16 %v1433
    %v1759 = vunpack.c.l.b16 %v1434
    %v1760 = vunpack.c.h.b16 %v1434
    %v1761 = vunpack.c.l.b16 %v1435
    %v1762 = vunpack.c.l.b16 %v1436
    %v1763 = vunpack.c.h.b16 %v1436
    %v1764 = vunpack.c.l.b16 %v1437
    %v1765 = vunpack.c.h.b16 %v1437
    %v1766 = vunpack.c.l.b16 %v1438
    %v1767 = vunpack.c.h.b16 %v1438
    %v1768 = vunpack.c.l.b16 %v1439
    %v1769 = vunpack.c.l.b16 %v1440
    %v1770 = vunpack.c.h.b16 %v1440
    %v1771 = vunpack.c.l.b16 %v1441
    %v1772 = vunpack.c.h.b16 %v1441
    %v1773 = vunpack.c.l.b16 %v1442
    %v1774 = vunpack.c.h.b16 %v1442
    %v1775 = vunpack.c.l.b16 %v1443
    %v1776 = vunpack.c.l.b16 %v1444
    %v1777 = vunpack.c.h.b16 %v1444
    %v1778 = vunpack.c.l.b16 %v1445
    %v1779 = vunpack.c.h.b16 %v1445
    %v1780 = vunpack.c.l.b16 %v1446
    %v1781 = vunpack.c.h.b16 %v1446
    %v1782 = vunpack.c.l.b16 %v1447
    %v1783 = vunpack.c.l.b16 %v1448
    %v1784 = vunpack.c.h.b16 %v1448
    %v1785 = vunpack.c.l.b16 %v1449
    %v1786 = vunpack.c.h.b16 %v1449
    %v1787 = vunpack.c.l.b16 %v1450
    %v1788 = vunpack.c.h.b16 %v1450
    %v1789 = vunpack.c.l.b16 %v1451
    %v1790 = vunpack.c.l.b16 %v1452
    %v1791 = vunpack.c.h.b16 %v1452
    %v1792 = vunpack.c.l.b16 %v1453
    %v1793 = vunpack.c.h.b16 %v1453
    %v1794 = vunpack.c.l.b16 %v1454
    %v1795 = vunpack.c.h.b16 %v1454
    %v1796 = vunpack.c.l.b16 %v1455
    %v1797 = vunpack.c.l.b16 %v1456
    %v1798 = vunpack.c.h.b16 %v1456
    %v1799 = vunpack.c.l.b16 %v1457
    %v1800 = vunpack.c.h.b16 %v1457
    %v1801 = vunpack.c.l.b16 %v1458
    %v1802 = vunpack.c.h.b16 %v1458
    %v1803 = vunpack.c.l.b16 %v1459
    %v1804 = vunpack.c.l.b16 %v1460
    %v1805 = vunpack.c.h.b16 %v1460
    %v1806 = vunpack.c.l.b16 %v1461
    %v1807 = vunpack.c.h.b16 %v1461
    %v1808 = vunpack.c.l.b16 %v1462
    %v1809 = vunpack.c.h.b16 %v1462
    %v1810 = vunpack.c.l.b16 %v1463
    %v1811 = vunpack.c.l.b16 %v1464
    %v1812 = vunpack.c.h.b16 %v1464
    %v1813 = vunpack.c.l.b16 %v1465
    %v1814 = vunpack.c.h.b16 %v1465
    %v1815 = vunpack.c.l.b16 %v1466
    %v1816 = vunpack.c.h.b16 %v1466
    %v1817 = vunpack.c.l.b16 %v1467
    %v1818 = vunpack.c.l.b16 %v1468
    %v1819 = vunpack.c.h.b16 %v1468
    %v1820 = vunpack.c.l.b16 %v1469
    %v1821 = vunpack.c.h.b16 %v1469
    %v1822 = vunpack.c.l.b16 %v1470
    %v1823 = vunpack.c.h.b16 %v1470
    %v1824 = vunpack.c.l.b16 %v1471
    %v1825 = vunpack.c.l.b16 %v1472
    %v1826 = vunpack.c.h.b16 %v1472
    %v1827 = vunpack.c.l.b16 %v1473
    %v1828 = vunpack.c.h.b16 %v1473
    %v1829 = vunpack.c.l.b16 %v1474
    %v1830 = vunpack.c.h.b16 %v1474
    %v1831 = vunpack.c.l.b16 %v1475
    %v1832 = vunpack.c.l.b16 %v1476
    %v1833 = vunpack.c.h.b16 %v1476
    %v1834 = vunpack.c.l.b16 %v1477
    %v1835 = vunpack.c.h.b16 %v1477
    %v1836 = vunpack.c.l.b16 %v1478
    %v1837 = vunpack.c.h.b16 %v1478
    %v1838 = vunpack.c.l.b16 %v1479
    %v1839 = vunpack.c.l.b16 %v1480
    %v1840 = vunpack.c.h.b16 %v1480
    %v1841 = vunpack.c.l.b16 %v1481
    %v1842 = vunpack.c.h.b16 %v1481
    %v1843 = vunpack.c.l.b16 %v1482
    %v1844 = vunpack.c.h.b16 %v1482
    %v1845 = vunpack.c.l.b16 %v1483
    %v1846 = vunpack.c.l.b16 %v1484
    %v1847 = vunpack.c.h.b16 %v1484
    %v1848 = vunpack.c.l.b16 %v1485
    %v1849 = vunpack.c.h.b16 %v1485
    %v1850 = vunpack.c.l.b16 %v1486
    %v1851 = vunpack.c.h.b16 %v1486
    %v1852 = vunpack.c.l.b16 %v1487
    %v1853 = vunpack.c.l.b16 %v1488
    %v1854 = vunpack.c.h.b16 %v1488
    %v1855 = vunpack.c.l.b16 %v1489
    %v1856 = vunpack.c.h.b16 %v1489
    %v1857 = vunpack.c.l.b16 %v1490
    %v1858 = vunpack.c.h.b16 %v1490
    %v1859 = vunpack.c.l.b16 %v1491
    %v1860 = vunpack.c.l.b16 %v1492
    %v1861 = vunpack.c.h.b16 %v1492
    %v1862 = vunpack.c.l.b16 %v1493
    %v1863 = vunpack.c.h.b16 %v1493
    %v1864 = vunpack.c.l.b16 %v1494
    %v1865 = vunpack.c.h.b16 %v1494
    %v1866 = vunpack.c.l.b16 %v1495
    %v1867 = vunpack.c.l.b16 %v1496
    %v1868 = vunpack.c.h.b16 %v1496
    %v1869 = vunpack.c.l.b16 %v1497
    %v1870 = vunpack.c.h.b16 %v1497
    %v1871 = vunpack.c.l.b16 %v1498
    %v1872 = vunpack.c.h.b16 %v1498
    %v1873 = vunpack.c.l.b16 %v1499
    %v1874 = vunpack.c.l.b16 %v1500
    %v1875 = vunpack.c.h.b16 %v1500
    %v1876 = vunpack.c.l.b16 %v1501
    %v1877 = vunpack.c.h.b16 %v1501
    %v1878 = vunpack.c.l.b16 %v1502
    %v1879 = vunpack.c.h.b16 %v1502
    %v1880 = vunpack.c.l.b16 %v1503
    %v1881 = vunpack.c.l.b16 %v1504
    %v1882 = vunpack.c.h.b16 %v1504
    %v1883 = vunpack.c.l.b16 %v1505
    %v1884 = vunpack.c.h.b16 %v1505
    %v1885 = vunpack.c.l.b16 %v1506
    %v1886 = vunpack.c.h.b16 %v1506
    %v1887 = vunpack.c.l.b16 %v1507
    %v1888 = vunpack.c.l.b16 %v1508
    %v1889 = vunpack.c.h.b16 %v1508
    %v1890 = vunpack.c.l.b16 %v1509
    %v1891 = vunpack.c.h.b16 %v1509
    %v1892 = vunpack.c.l.b16 %v1510
    %v1893 = vunpack.c.h.b16 %v1510
    %v1894 = vunpack.c.l.b16 %v1511
    %v1895 = vunpack.c.l.b16 %v1512
    %v1896 = vunpack.c.h.b16 %v1512
    %v1897 = vunpack.c.l.b16 %v1513
    %v1898 = vunpack.c.h.b16 %v1513
    %v1899 = vunpack.c.l.b16 %v1514
    %v1900 = vunpack.c.h.b16 %v1514
    %v1901 = vunpack.c.l.b16 %v1515
    %v1902 = vunpack.c.l.b16 %v1516
    %v1903 = vunpack.c.h.b16 %v1516
    %v1904 = vunpack.c.l.b16 %v1517
    %v1905 = vunpack.c.h.b16 %v1517
    %v1906 = vunpack.c.l.b16 %v1518
    %v1907 = vunpack.c.h.b16 %v1518
    %v1908 = vunpack.c.l.b16 %v1519
    %v1909 = vpack.c.b16 %v1692, %v1685
    %v1910 = vpack.c.b16 %v1693, %v1686
    %v1911 = vpack.c.b16 %v1694, %v1687
    %v1912 = vpack.c.b16 %v1695, %v1688
    %v1913 = vpack.c.b16 %v1696, %v1689
    %v1914 = vpack.c.b16 %v1697, %v1690
    %v1915 = vpack.c.b16 %v1698, %v1691
    %v1916 = vpack.c.b16 %v1706, %v1699
    %v1917 = vpack.c.b16 %v1707, %v1700
    %v1918 = vpack.c.b16 %v1708, %v1701
    %v1919 = vpack.c.b16 %v1709, %v1702
    %v1920 = vpack.c.b16 %v1710, %v1703
    %v1921 = vpack.c.b16 %v1711, %v1704
    %v1922 = vpack.c.b16 %v1712, %v1705
    %v1923 = vpack.c.b16 %v1720, %v1713
    %v1924 = vpack.c.b16 %v1721, %v1714
    %v1925 = vpack.c.b16 %v1722, %v1715
    %v1926 = vpack.c.b16 %v1723, %v1716
    %v1927 = vpack.c.b16 %v1724, %v1717
    %v1928 = vpack.c.b16 %v1725, %v1718
    %v1929 = vpack.c.b16 %v1726, %v1719
    %v1930 = vpack.c.b16 %v1734, %v1727
    %v1931 = vpack.c.b16 %v1735, %v1728
    %v1932 = vpack.c.b16 %v1736, %v1729
    %v1933 = vpack.c.b16 %v1737, %v1730
    %v1934 = vpack.c.b16 %v1738, %v1731
    %v1935 = vpack.c.b16 %v1739, %v1732
    %v1936 = vpack.c.b16 %v1740, %v1733
    %v1937 = vpack.c.b16 %v1748, %v1741
    %v1938 = vpack.c.b16 %v1749, %v1742
    %v1939 = vpack.c.b16 %v1750, %v1743
    %v1940 = vpack.c.b16 %v1751, %v1744
    %v1941 = vpack.c.b16 %v1752, %v1745
    %v1942 = vpack.c.b16 %v1753, %v1746
    %v1943 = vpack.c.b16 %v1754, %v1747
    %v1944 = vpack.c.b16 %v1762, %v1755
    %v1945 = vpack.c.b16 %v1763, %v1756
    %v1946 = vpack.c.b16 %v1764, %v1757
    %v1947 = vpack.c.b16 %v1765, %v1758
    %v1948 = vpack.c.b16 %v1766, %v1759
    %v1949 = vpack.c.b16 %v1767, %v1760
    %v1950 = vpack.c.b16 %v1768, %v1761
    %v1951 = vpack.c.b16 %v1776, %v1769
    %v1952 = vpack.c.b16 %v1777, %v1770
    %v1953 = vpack.c.b16 %v1778, %v1771
    %v1954 = vpack.c.b16 %v1779, %v1772
    %v1955 = vpack.c.b16 %v1780, %v1773
    %v1956 = vpack.c.b16 %v1781, %v1774
    %v1957 = vpack.c.b16 %v1782, %v1775
    %v1958 = vpack.c.b16 %v1790, %v1783
    %v1959 = vpack.c.b16 %v1791, %v1784
    %v1960 = vpack.c.b16 %v1792, %v1785
    %v1961 = vpack.c.b16 %v1793, %v1786
    %v1962 = vpack.c.b16 %v1794, %v1787
    %v1963 = vpack.c.b16 %v1795, %v1788
    %v1964 = vpack.c.b16 %v1796, %v1789
    %v1965 = vpack.c.b16 %v1804, %v1797
    %v1966 = vpack.c.b16 %v1805, %v1798
    %v1967 = vpack.c.b16 %v1806, %v1799
    %v1968 = vpack.c.b16 %v1807, %v1800
    %v1969 = vpack.c.b16 %v1808, %v1801
    %v1970 = vpack.c.b16 %v1809, %v1802
    %v1971 = vpack.c.b16 %v1810, %v1803
    %v1972 = vpack.c.b16 %v1818, %v1811
    %v1973 = vpack.c.b16 %v1819, %v1812
    %v1974 = vpack.c.b16 %v1820, %v1813
    %v1975 = vpack.c.b16 %v1821, %v1814
    %v1976 = vpack.c.b16 %v1822, %v1815
    %v1977 = vpack.c.b16 %v1823, %v1816
    %v1978 = vpack.c.b16 %v1824, %v1817
    %v1979 = vpack.c.b16 %v1832, %v1825
    %v1980 = vpack.c.b16 %v1833, %v1826
    %v1981 = vpack.c.b16 %v1834, %v1827
    %v1982 = vpack.c.b16 %v1835, %v1828
    %v1983 = vpack.c.b16 %v1836, %v1829
    %v1984 = vpack.c.b16 %v1837, %v1830
    %v1985 = vpack.c.b16 %v1838, %v1831
    %v1986 = vpack.c.b16 %v1846, %v1839
    %v1987 = vpack.c.b16 %v1847, %v1840
    %v1988 = vpack.c.b16 %v1848, %v1841
    %v1989 = vpack.c.b16 %v1849, %v1842
    %v1990 = vpack.c.b16 %v1850, %v1843
    %v1991 = vpack.c.b16 %v1851, %v1844
    %v1992 = vpack.c.b16 %v1852, %v1845
    %v1993 = vpack.c.b16 %v1860, %v1853
    %v1994 = vpack.c.b16 %v1861, %v1854
    %v1995 = vpack.c.b16 %v1862, %v1855
    %v1996 = vpack.c.b16 %v1863, %v1856
    %v1997 = vpack.c.b16 %v1864, %v1857
    %v1998 = vpack.c.b16 %v1865, %v1858
    %v1999 = vpack.c.b16 %v1866, %v1859
    %v2000 = vpack.c.b16 %v1874, %v1867
    %v2001 = vpack.c.b16 %v1875, %v1868
    %v2002 = vpack.c.b16 %v1876, %v1869
    %v2003 = vpack.c.b16 %v1877, %v1870
    %v2004 = vpack.c.b16 %v1878, %v1871
    %v2005 = vpack.c.b16 %v1879, %v1872
    %v2006 = vpack.c.b16 %v1880, %v1873
    %v2007 = vpack.c.b16 %v1888, %v1881
    %v2008 = vpack.c.b16 %v1889, %v1882
    %v2009 = vpack.c.b16 %v1890, %v1883
    %v2010 = vpack.c.b16 %v1891, %v1884
    %v2011 = vpack.c.b16 %v1892, %v1885
    %v2012 = vpack.c.b16 %v1893, %v1886
    %v2013 = vpack.c.b16 %v1894, %v1887
    %v2014 = vpack.c.b16 %v1902, %v1895
    %v2015 = vpack.c.b16 %v1903, %v1896
    %v2016 = vpack.c.b16 %v1904, %v1897
    %v2017 = vpack.c.b16 %v1905, %v1898
    %v2018 = vpack.c.b16 %v1906, %v1899
    %v2019 = vpack.c.b16 %v1907, %v1900
    %v2020 = vpack.c.b16 %v1908, %v1901
    %2133 = vmatprep.subr.bf16.mxu0 %v1959
    %2134 = vmatpush1.bf16.msra.mxu0 %v1958
    %2135 = vmatprep.subr.bf16.mxu0 %v1952
    %2136 = vmatpush1.bf16.msra.mxu0 %v1951
    %2137 = vmatprep.subr.bf16.mxu0 %v1945
    %2138 = vmatpush1.bf16.msra.mxu0 %v1944
    %2139 = vmatprep.subr.bf16.mxu0 %v1938
    %2140 = vmatpush1.bf16.msra.mxu0 %v1937
    %2141 = vmatprep.subr.bf16.mxu0 %v1931
    %2142 = vmatpush1.bf16.msra.mxu0 %v1930
    %2143 = vmatprep.subr.bf16.mxu0 %v1924
    %2144 = vmatpush1.bf16.msra.mxu0 %v1923
    %2145 = vmatprep.subr.bf16.mxu0 %v1917
    %2146 = vmatpush1.bf16.msra.mxu0 %v1916
    %2147 = vmatprep.subr.bf16.mxu0 %v1910
    %2148 = vmatpush1.bf16.msra.mxu0 %v1909
    %2149 = vmatprep.subr.bf16.mxu0 %v2015
    %2150 = vmatpush2.bf16.msra.mxu0 %v2014
    %2151 = vmatprep.subr.bf16.mxu0 %v2008
    %2152 = vmatpush2.bf16.msra.mxu0 %v2007
    %2153 = vmatprep.subr.bf16.mxu0 %v2001
    %2154 = vmatpush2.bf16.msra.mxu0 %v2000
    %2155 = vmatprep.subr.bf16.mxu0 %v1994
    %2156 = vmatpush2.bf16.msra.mxu0 %v1993
    %2157 = vmatprep.subr.bf16.mxu0 %v1987
    %2158 = vmatpush2.bf16.msra.mxu0 %v1986
    %2159 = vmatprep.subr.bf16.mxu0 %v1980
    %2160 = vmatpush2.bf16.msra.mxu0 %v1979
    %2161 = vmatprep.subr.bf16.mxu0 %v1973
    %2162 = vmatpush2.bf16.msra.mxu0 %v1972
    %2163 = vmatprep.subr.bf16.mxu0 %v1966
    %2164 = vmatpush2.bf16.msra.mxu0 %v1965
    %2165 = vmatprep.mubr.bf16.mxu0 %v1391
    %2166 = vmatmul.mubr.bf16.gmra.mxu0 %v1390
    %v2167 = vpop.f32.mrf.mxu0
    %v2168 = vadd.f32 %v1525, %v2167
    %v2169 = vpop.f32.mrf.mxu0
    %v2170 = vadd.f32 %v1529, %v2169
    %v2171 = vpop.f32.mrf.mxu0
    %v2172 = vpop.f32.mrf.mxu0
    %2173 = vdwg.mxu0
    %2174 = vmatprep.subr.bf16.mxu0 %v1961
    %2175 = vmatpush1.bf16.msra.mxu0 %v1960
    %2176 = vmatprep.subr.bf16.mxu0 %v1954
    %2177 = vmatpush1.bf16.msra.mxu0 %v1953
    %2178 = vmatprep.subr.bf16.mxu0 %v1947
    %2179 = vmatpush1.bf16.msra.mxu0 %v1946
    %2180 = vmatprep.subr.bf16.mxu0 %v1940
    %2181 = vmatpush1.bf16.msra.mxu0 %v1939
    %2182 = vmatprep.subr.bf16.mxu0 %v1933
    %2183 = vmatpush1.bf16.msra.mxu0 %v1932
    %2184 = vmatprep.subr.bf16.mxu0 %v1926
    %2185 = vmatpush1.bf16.msra.mxu0 %v1925
    %2186 = vmatprep.subr.bf16.mxu0 %v1919
    %2187 = vmatpush1.bf16.msra.mxu0 %v1918
    %2188 = vmatprep.subr.bf16.mxu0 %v1912
    %2189 = vmatpush1.bf16.msra.mxu0 %v1911
    %2190 = vmatprep.subr.bf16.mxu0 %v2017
    %2191 = vmatpush2.bf16.msra.mxu0 %v2016
    %2192 = vmatprep.subr.bf16.mxu0 %v2010
    %2193 = vmatpush2.bf16.msra.mxu0 %v2009
    %2194 = vmatprep.subr.bf16.mxu0 %v2003
    %2195 = vmatpush2.bf16.msra.mxu0 %v2002
    %2196 = vmatprep.subr.bf16.mxu0 %v1996
    %2197 = vmatpush2.bf16.msra.mxu0 %v1995
    %2198 = vmatprep.subr.bf16.mxu0 %v1989
    %2199 = vmatpush2.bf16.msra.mxu0 %v1988
    %2200 = vmatprep.subr.bf16.mxu0 %v1982
    %2201 = vmatpush2.bf16.msra.mxu0 %v1981
    %2202 = vmatprep.subr.bf16.mxu0 %v1975
    %2203 = vmatpush2.bf16.msra.mxu0 %v1974
    %2204 = vmatprep.subr.bf16.mxu0 %v1968
    %2205 = vmatpush2.bf16.msra.mxu0 %v1967
    %2206 = vmatprep.mubr.bf16.mxu0 %v1391
    %2207 = vmatmul.mubr.bf16.gmra.mxu0 %v1390
    %v2208 = vpop.f32.mrf.mxu0
    %v2209 = vadd.f32 %v1533, %v2208
    %v2210 = vpop.f32.mrf.mxu0
    %v2211 = vadd.f32 %v1537, %v2210
    %v2212 = vpop.f32.mrf.mxu0
    %v2213 = vpop.f32.mrf.mxu0
    %2214 = vdwg.mxu0
    %2215 = vmatprep.subr.bf16.mxu0 %v1963
    %2216 = vmatpush1.bf16.msra.mxu0 %v1962
    %2217 = vmatprep.subr.bf16.mxu0 %v1956
    %2218 = vmatpush1.bf16.msra.mxu0 %v1955
    %2219 = vmatprep.subr.bf16.mxu0 %v1949
    %2220 = vmatpush1.bf16.msra.mxu0 %v1948
    %2221 = vmatprep.subr.bf16.mxu0 %v1942
    %2222 = vmatpush1.bf16.msra.mxu0 %v1941
    %2223 = vmatprep.subr.bf16.mxu0 %v1935
    %2224 = vmatpush1.bf16.msra.mxu0 %v1934
    %2225 = vmatprep.subr.bf16.mxu0 %v1928
    %2226 = vmatpush1.bf16.msra.mxu0 %v1927
    %2227 = vmatprep.subr.bf16.mxu0 %v1921
    %2228 = vmatpush1.bf16.msra.mxu0 %v1920
    %2229 = vmatprep.subr.bf16.mxu0 %v1914
    %2230 = vmatpush1.bf16.msra.mxu0 %v1913
    %2231 = vmatprep.subr.bf16.mxu0 %v2019
    %2232 = vmatpush2.bf16.msra.mxu0 %v2018
    %2233 = vmatprep.subr.bf16.mxu0 %v2012
    %2234 = vmatpush2.bf16.msra.mxu0 %v2011
    %2235 = vmatprep.subr.bf16.mxu0 %v2005
    %2236 = vmatpush2.bf16.msra.mxu0 %v2004
    %2237 = vmatprep.subr.bf16.mxu0 %v1998
    %2238 = vmatpush2.bf16.msra.mxu0 %v1997
    %2239 = vmatprep.subr.bf16.mxu0 %v1991
    %2240 = vmatpush2.bf16.msra.mxu0 %v1990
    %2241 = vmatprep.subr.bf16.mxu0 %v1984
    %2242 = vmatpush2.bf16.msra.mxu0 %v1983
    %2243 = vmatprep.subr.bf16.mxu0 %v1977
    %2244 = vmatpush2.bf16.msra.mxu0 %v1976
    %2245 = vmatprep.subr.bf16.mxu0 %v1970
    %2246 = vmatpush2.bf16.msra.mxu0 %v1969
    %2247 = vmatprep.mubr.bf16.mxu0 %v1391
    %2248 = vmatmul.mubr.bf16.gmra.mxu0 %v1390
    %v2249 = vpop.f32.mrf.mxu0
    %v2250 = vadd.f32 %v1541, %v2249
    %v2251 = vpop.f32.mrf.mxu0
    %v2252 = vadd.f32 %v1545, %v2251
    %v2253 = vpop.f32.mrf.mxu0
    %v2254 = vpop.f32.mrf.mxu0
    %2255 = vdwg.mxu0
    %2256 = vmatprep.subr.bf16.mxu0 0
    %2257 = vmatpush1.bf16.msra.mxu0 %v1964
    %2258 = vmatprep.subr.bf16.mxu0 0
    %2259 = vmatpush1.bf16.msra.mxu0 %v1957
    %2260 = vmatprep.subr.bf16.mxu0 0
    %2261 = vmatpush1.bf16.msra.mxu0 %v1950
    %2262 = vmatprep.subr.bf16.mxu0 0
    %2263 = vmatpush1.bf16.msra.mxu0 %v1943
    %2264 = vmatprep.subr.bf16.mxu0 0
    %2265 = vmatpush1.bf16.msra.mxu0 %v1936
    %2266 = vmatprep.subr.bf16.mxu0 0
    %2267 = vmatpush1.bf16.msra.mxu0 %v1929
    %2268 = vmatprep.subr.bf16.mxu0 0
    %2269 = vmatpush1.bf16.msra.mxu0 %v1922
    %2270 = vmatprep.subr.bf16.mxu0 0
    %2271 = vmatpush1.bf16.msra.mxu0 %v1915
    %2272 = vmatprep.subr.bf16.mxu0 0
    %2273 = vmatpush2.bf16.msra.mxu0 %v2020
    %2274 = vmatprep.subr.bf16.mxu0 0
    %2275 = vmatpush2.bf16.msra.mxu0 %v2013
    %2276 = vmatprep.subr.bf16.mxu0 0
    %2277 = vmatpush2.bf16.msra.mxu0 %v2006
    %2278 = vmatprep.subr.bf16.mxu0 0
    %2279 = vmatpush2.bf16.msra.mxu0 %v1999
    %2280 = vmatprep.subr.bf16.mxu0 0
    %2281 = vmatpush2.bf16.msra.mxu0 %v1992
    %2282 = vmatprep.subr.bf16.mxu0 0
    %2283 = vmatpush2.bf16.msra.mxu0 %v1985
    %2284 = vmatprep.subr.bf16.mxu0 0
    %2285 = vmatpush2.bf16.msra.mxu0 %v1978
    %2286 = vmatprep.subr.bf16.mxu0 0
    %2287 = vmatpush2.bf16.msra.mxu0 %v1971
    %2288 = vmatprep.mubr.bf16.mxu0 %v1391
    %2289 = vmatmul.mubr.bf16.gmra.mxu0 %v1390
    %v2290 = vpop.f32.mrf.mxu0
    %v2291 = vadd.f32 %v1549, %v2290
    %v2292 = vpop.f32.mrf.mxu0
    %v2293 = vpop.f32.mrf.mxu0
    %v2294 = vpop.f32.mrf.mxu0
    %2295 = vdwg.mxu0
    %v2296 = vxor.u32 %v2168, 2147483648
    %v2297 = vxor.u32 %v2170, 2147483648
    %v2298 = vxor.u32 %v2209, 2147483648
    %v2299 = vxor.u32 %v2211, 2147483648
    %v2300 = vxor.u32 %v2250, 2147483648
    %v2301 = vxor.u32 %v2252, 2147483648
    %v2302 = vxor.u32 %v2291, 2147483648
    %v2303 = vmul.f32 %v2296, 1.442695
    %v2304 = vpow.pop %v2303
    %v2305 = vmul.f32 %v2297, 1.442695
    %v2306 = vpow.pop %v2305
    %v2307 = vmul.f32 %v2298, 1.442695
    %v2308 = vpow.pop %v2307
    %v2309 = vmul.f32 %v2299, 1.442695
    %v2310 = vpow.pop %v2309
    %v2311 = vmul.f32 %v2300, 1.442695
    %v2312 = vpow.pop %v2311
    %v2313 = vmul.f32 %v2301, 1.442695
    %v2314 = vpow.pop %v2313
    %v2315 = vmul.f32 %v2302, 1.442695
    %v2316 = vpow.pop %v2315
    %v2317 = vadd.f32 %v2304, 1.0
    %v2318 = vadd.f32 %v2306, 1.0
    %v2319 = vadd.f32 %v2308, 1.0
    %v2320 = vadd.f32 %v2310, 1.0
    %v2321 = vadd.f32 %v2312, 1.0
    %v2322 = vadd.f32 %v2314, 1.0
    %v2323 = vadd.f32 %v2316, 1.0
    %v2324 = vrcp.pop %v2317
    %v2325 = vmul.f32 1.0, %v2324
    %v2326 = vrcp.pop %v2318
    %v2327 = vmul.f32 1.0, %v2326
    %v2328 = vrcp.pop %v2319
    %v2329 = vmul.f32 1.0, %v2328
    %v2330 = vrcp.pop %v2320
    %v2331 = vmul.f32 1.0, %v2330
    %v2332 = vrcp.pop %v2321
    %v2333 = vmul.f32 1.0, %v2332
    %v2334 = vrcp.pop %v2322
    %v2335 = vmul.f32 1.0, %v2334
    %v2336 = vrcp.pop %v2323
    %v2337 = vmul.f32 1.0, %v2336
    %v2338 = vpack.c.bf16 %v2325, %v2325
    %v2339 = vpack.c.bf16 %v2327, %v2327
    %v2340 = vpack.c.bf16 %v2329, %v2329
    %v2341 = vpack.c.bf16 %v2331, %v2331
    %v2342 = vpack.c.bf16 %v2333, %v2333
    %v2343 = vpack.c.bf16 %v2335, %v2335
    %v2344 = vpack.c.bf16 %v2337, %v2337
    %v2352 = vunpack.c.l.b16 %v2338
    %v2353 = vunpack.c.l.b16 %v2339
    %v2354 = vunpack.c.l.b16 %v2340
    %v2355 = vunpack.c.l.b16 %v2341
    %v2356 = vunpack.c.l.b16 %v2342
    %v2357 = vunpack.c.l.b16 %v2343
    %v2358 = vunpack.c.l.b16 %v2344
    %v2359 = vpack.c.b16 %v2353, %v2352
    %v2360 = vpack.c.b16 %v2355, %v2354
    %v2361 = vpack.c.b16 %v2357, %v2356
    %v2362 = vpack.c.b16 %v2358, %v2358
    %2367 = vst [vmem:[#allocation2] sm:$0xff] %v2359
    %2368 = vst [vmem:[#allocation2 + $0x8] sm:$0xff] %v2360
    %2369 = vst [vmem:[#allocation2 + $0x10] sm:$0xff] %v2361
    %vm2370 = vcmask 125952
    %2371 = vst.msk [vmem:[#allocation2 + $0x18] sm:$0xf] %vm2370, %v2362
    // Predicated region
    $region54: #{vae_forward.1} parent=1 // pred_check
      _
    $region55: #{vae_forward.1} parent=1 // pred_check_branch
      %2373 = sbr.rel (0) target = $region57
    $region56: #{vae_forward.1} parent=1 // pred_region
      %s2375 = ssub.s32 448, 448
      %2376 = vsyncadd [#allocation3], %s2375
      %s2378 = sshll.u32 [#allocation2], 4
      %s2379 = int_to_ptr.vmem [resolvable:$true] %s2378
      %2381 = dma.vmem_to_hbm [thread:$0]  %s2379, 448, %s13, [#allocation3]
    $region57: #{vae_forward.1} parent=1 // pred_fallthru
      _
    // Predicated region
    $region58: #{vae_forward.1} parent=1 // pred_check
      _
    $region59: #{vae_forward.1} parent=1 // pred_check_branch
      %2383 = sbr.rel (0) target = $region61
    $region60: #{vae_forward.1} parent=1 // pred_region
      %s2385 = ssub.s32 128, 128
      %2386 = vsyncadd [#allocation5], %s2385
      %s2388 = sshll.u32 [#allocation4], 4
      %s2389 = int_to_ptr.vmem [resolvable:$true] %s2388
      %2391 = dma.vmem_to_hbm [thread:$0]  %s2389, 128, %s14, [#allocation5]
    $region61: #{vae_forward.1} parent=1 // pred_fallthru
      _
    // Predicated region
    $region62: #{vae_forward.1} parent=1 // pred_check
      _
    $region63: #{vae_forward.1} parent=1 // pred_check_branch
      %2393 = sbr.rel (0) target = $region65
    $region64: #{vae_forward.1} parent=1 // pred_region
      %2394 = dma.done [#allocation3], 448
    $region65: #{vae_forward.1} parent=1 // pred_fallthru
      _
    // Predicated region
    $region66: #{vae_forward.1} parent=1 // pred_check
      _
    $region67: #{vae_forward.1} parent=1 // pred_check_branch
      %2396 = sbr.rel (0) target = $region69
    $region68: #{vae_forward.1} parent=1 // pred_region
      %2397 = dma.done [#allocation5], 128
    $region69: #{vae_forward.1} parent=1 // pred_fallthru
      _
    %2398 = vsyncpa [#allocation3], 1
    %2399 = vsyncpa [#allocation5], 1

</llo_original>
